<compile_context>
chip_gen: v5e
topology: v5e:2x2
jax: 0.10.0
libtpu: 0.0.40
codegen_flags: <defaults>
</compile_context>

<pallas_src>
import jax
import jax.numpy as jnp
from jax import lax
from jax.experimental import pallas as pl
from jax.experimental.pallas import tpu as pltpu
import numpy as np


# ----------------------------------------------------------------------------
# MLP + hoisted layer-0 LSTM input projection (3 fused matmuls, one kernel):
#   y  = relu( relu(x @ W1t + b1) @ W2t + b2 )
#   gx = y @ Wih0t + (b_ih0 + b_hh0)
# Dropout(p=0.05) is identity at inference time.
# ----------------------------------------------------------------------------
def mlp_proj_kernel(x_ref, w1_ref, b1_ref, w2_ref, b2_ref, wih0_ref, bias0_ref,
                    o_ref):
    x = x_ref[...]
    h = jnp.maximum(
        jnp.dot(x, w1_ref[...], preferred_element_type=jnp.float32) + b1_ref[...],
        0.0)
    # TODO(synk): Dropout(0.05) omitted (inference mode == identity).
    y = jnp.maximum(
        jnp.dot(h, w2_ref[...], preferred_element_type=jnp.float32) + b2_ref[...],
        0.0)
    o_ref[...] = (jnp.dot(y, wih0_ref[...], preferred_element_type=jnp.float32)
                  + bias0_ref[...]).astype(o_ref.dtype)


def _pick_block_rows(n):
    # Prefer >=2 sublane-aligned row blocks (lets megacore split the MLP on v7x);
    # otherwise fall back to one resident block.
    for cand in (512, 256, 128, 64, 32, 16, 8):
        if n % cand == 0 and n // cand >= 2:
            return cand
    return n


def run_mlp_proj(x2d, w1t, b1, w2t, b2, wih0t, bias0):
    n, in_dim = x2d.shape
    hd = w1t.shape[1]
    g4 = wih0t.shape[1]
    bm = _pick_block_rows(n)
    return pl.pallas_call(
        mlp_proj_kernel,
        out_shape=jax.ShapeDtypeStruct((n, g4), jnp.float32),
        grid=(n // bm,),
        in_specs=[
            pl.BlockSpec((bm, in_dim), lambda i: (i, 0)),
            pl.BlockSpec((in_dim, hd), lambda i: (0, 0)),
            pl.BlockSpec((1, hd), lambda i: (0, 0)),
            pl.BlockSpec((hd, in_dim), lambda i: (0, 0)),
            pl.BlockSpec((1, in_dim), lambda i: (0, 0)),
            pl.BlockSpec((in_dim, g4), lambda i: (0, 0)),
            pl.BlockSpec((1, g4), lambda i: (0, 0)),
        ],
        out_specs=pl.BlockSpec((bm, g4), lambda i: (i, 0)),
        compiler_params=pltpu.CompilerParams(dimension_semantics=("parallel",)),
    )(x2d, w1t, b1.reshape(1, hd), w2t, b2.reshape(1, in_dim),
      wih0t, bias0.reshape(1, g4))


# ----------------------------------------------------------------------------
# Fused multi-layer LSTM.  grid=(T,), sequential.  Gate order: [i, f, g, o].
# Layer 0 consumes the precomputed x-gates; layers >= 1 project the fresh h of
# the layer below in-step (unavoidable: it only exists at time t).
# ----------------------------------------------------------------------------
def make_fused_lstm_kernel(num_layers, hidden_dim):
    H = hidden_dim

    def kernel(*refs):
        if num_layers > 1:
            (gx_ref, whh_ref, wih_ref, bias_ref, h0_ref, c0_ref,
             out_ref, hT_ref, cT_ref, h_scr, c_scr) = refs
        else:
            (gx_ref, whh_ref, h0_ref, c0_ref,
             out_ref, hT_ref, cT_ref, h_scr, c_scr) = refs
            wih_ref = bias_ref = None

        t = pl.program_id(0)

        @pl.when(t == 0)
        def _():
            h_scr[...] = h0_ref[...]
            c_scr[...] = c0_ref[...]

        gx = gx_ref[t]                      # (B, 4H) hoisted layer-0 input gates
        h_below = None                      # h_t of layer l-1 (for l >= 1)
        for l in range(num_layers):
            h_prev = h_scr[l]               # (B, H)
            c_prev = c_scr[l]               # (B, H)
            if l == 0:
                gates = gx + jnp.dot(h_prev, whh_ref[l],
                                     preferred_element_type=jnp.float32)
            else:
                gates = (jnp.dot(h_below, wih_ref[l - 1],
                                 preferred_element_type=jnp.float32)
                         + bias_ref[l - 1]
                         + jnp.dot(h_prev, whh_ref[l],
                                   preferred_element_type=jnp.float32))
            # Full-width activations (2 EUP pushes over (B, 4H)), then slice gates.
            sig = jax.nn.sigmoid(gates)
            tnh = jnp.tanh(gates)
            i_g = sig[:, 0:H]
            f_g = sig[:, H:2 * H]
            g_g = tnh[:, 2 * H:3 * H]
            o_g = sig[:, 3 * H:4 * H]

            c_new = f_g * c_prev + i_g * g_g
            h_new = o_g * jnp.tanh(c_new)

            h_scr[l] = h_new
            c_scr[l] = c_new
            h_below = h_new

        out_ref[t] = h_below.astype(out_ref.dtype)

        @pl.when(t == pl.num_programs(0) - 1)
        def _():
            hT_ref[...] = h_scr[...].astype(hT_ref.dtype)
            cT_ref[...] = c_scr[...].astype(cT_ref.dtype)

    return kernel


def run_fused_lstm(gx0, whh_t, wih_t_rest, bias_rest, h0, c0):
    T, B, G4 = gx0.shape
    L, H, _ = whh_t.shape

    in_specs = [
        # Fully VMEM-resident layer-0 gate sequence (no per-step DMA).
        pl.BlockSpec((T, B, G4), lambda t: (0, 0, 0)),
        # Constant-index weights: DMA'd in once for the whole grid.
        pl.BlockSpec((L, H, G4), lambda t: (0, 0, 0)),
    ]
    args = [gx0, whh_t]
    if L > 1:
        in_specs += [
            pl.BlockSpec((L - 1, H, G4), lambda t: (0, 0, 0)),
            pl.BlockSpec((L - 1, 1, G4), lambda t: (0, 0, 0)),
        ]
        args += [wih_t_rest, bias_rest]
    in_specs += [
        pl.BlockSpec((L, B, H), lambda t: (0, 0, 0)),
        pl.BlockSpec((L, B, H), lambda t: (0, 0, 0)),
    ]
    args += [h0, c0]

    out_shape = (
        jax.ShapeDtypeStruct((T, B, H), jnp.float32),
        jax.ShapeDtypeStruct((L, B, H), jnp.float32),
        jax.ShapeDtypeStruct((L, B, H), jnp.float32),
    )
    out_specs = (
        pl.BlockSpec((T, B, H), lambda t: (0, 0, 0)),   # resident output sequence
        pl.BlockSpec((L, B, H), lambda t: (0, 0, 0)),
        pl.BlockSpec((L, B, H), lambda t: (0, 0, 0)),
    )

    return pl.pallas_call(
        make_fused_lstm_kernel(L, H),
        out_shape=out_shape,
        grid=(T,),
        in_specs=in_specs,
        out_specs=out_specs,
        scratch_shapes=[pltpu.VMEM((L, B, H), jnp.float32),
                        pltpu.VMEM((L, B, H), jnp.float32)],
        compiler_params=pltpu.CompilerParams(
            dimension_semantics=("arbitrary",)),     # time recurrence is sequential
    )(*args)


# ----------------------------------------------------------------------------
# Full Encoder forward (Pallas kernels + wrapper-side layout plumbing)
# ----------------------------------------------------------------------------
def encoder_forward(x, hidden, params):
    """x: (T, B, input_size); hidden: (h0, c0) each (num_layers, B, hidden_dim)."""
    h0, c0 = hidden
    T, B, In = x.shape
    lstm = params["lstm"]
    L = len(lstm)
    H = lstm[0]["w_hh"].shape[1]

    # Wrapper-side: pre-transpose all weights, fold the two LSTM biases per layer.
    w1t = params["w1"].T                          # (In, H)
    w2t = params["w2"].T                          # (H, In)
    wih0t = lstm[0]["w_ih"].T                     # (In, 4H)
    bias0 = lstm[0]["b_ih"] + lstm[0]["b_hh"]     # (4H,)

    # MLP + hoisted layer-0 input projection: one big MXU-friendly matmul chain.
    gx0 = run_mlp_proj(x.reshape(T * B, In), w1t, params["b1"], w2t, params["b2"],
                       wih0t, bias0).reshape(T, B, 4 * H)

    whh_t = jnp.stack([lp["w_hh"].T for lp in lstm])                         # (L, H, 4H)
    if L > 1:
        wih_t_rest = jnp.stack([lstm[l]["w_ih"].T for l in range(1, L)])     # (L-1, H, 4H)
        bias_rest = jnp.stack(
            [(lstm[l]["b_ih"] + lstm[l]["b_hh"]).reshape(1, 4 * H)
             for l in range(1, L)])                                          # (L-1, 1, 4H)
    else:
        wih_t_rest = bias_rest = None

    out, h_n, c_n = run_fused_lstm(gx0, whh_t, wih_t_rest, bias_rest, h0, c0)
    return out, (h_n, c_n)


# ----------------------------------------------------------------------------
# Pure-JAX reference (for correctness check)
# ----------------------------------------------------------------------------
def encoder_reference(x, hidden, params):
    h0, c0 = hidden
    y = jnp.maximum(x @ params["w1"].T + params["b1"], 0.0)
    y = jnp.maximum(y @ params["w2"].T + params["b2"], 0.0)

    layer_in = y
    h_finals, c_finals = [], []
    for l, lp in enumerate(params["lstm"]):
        w_ih, w_hh, b_ih, b_hh = lp["w_ih"], lp["w_hh"], lp["b_ih"], lp["b_hh"]
        H = w_hh.shape[1]

        def step(carry, xt):
            h, c = carry
            gates = xt @ w_ih.T + b_ih + h @ w_hh.T + b_hh
            i = jax.nn.sigmoid(gates[:, 0:H])
            f = jax.nn.sigmoid(gates[:, H:2 * H])
            g = jnp.tanh(gates[:, 2 * H:3 * H])
            o = jax.nn.sigmoid(gates[:, 3 * H:4 * H])
            c_new = f * c + i * g
            h_new = o * jnp.tanh(c_new)
            return (h_new, c_new), h_new

        (hT, cT), outs = lax.scan(step, (h0[l], c0[l]), layer_in)
        layer_in = outs
        h_finals.append(hT)
        c_finals.append(cT)
    return layer_in, (jnp.stack(h_finals), jnp.stack(c_finals))


# ----------------------------------------------------------------------------
# Deterministic parameter init (PyTorch-style uniform(-1/sqrt(fan), 1/sqrt(fan)))
# ----------------------------------------------------------------------------
def init_params(key, input_size, hidden_dim, num_lstms):
    def uni(k, shape, bound):
        return jax.random.uniform(k, shape, jnp.float32, -bound, bound)

    keys = jax.random.split(key, 4 + 4 * num_lstms)
    kb1 = 1.0 / np.sqrt(input_size)
    kb2 = 1.0 / np.sqrt(hidden_dim)
    params = {
        "w1": uni(keys[0], (hidden_dim, input_size), kb1),
        "b1": uni(keys[1], (hidden_dim,), kb1),
        "w2": uni(keys[2], (input_size, hidden_dim), kb2),
        "b2": uni(keys[3], (input_size,), kb2),
        "lstm": [],
    }
    klstm = 1.0 / np.sqrt(hidden_dim)
    for l in range(num_lstms):
        in_l = input_size if l == 0 else hidden_dim
        k0, k1, k2, k3 = keys[4 + 4 * l: 8 + 4 * l]
        params["lstm"].append({
            "w_ih": uni(k0, (4 * hidden_dim, in_l), klstm),
            "w_hh": uni(k1, (4 * hidden_dim, hidden_dim), klstm),
            "b_ih": uni(k2, (4 * hidden_dim,), klstm),
            "b_hh": uni(k3, (4 * hidden_dim,), klstm),
        })
    return params


if __name__ == "__main__":
    seq_len, batch = 8, 2
    input_size, hidden_dim, num_lstms = 16, 32, 2

    key = jax.random.PRNGKey(0)
    kp, kx, kh, kc = jax.random.split(key, 4)

    params = init_params(kp, input_size, hidden_dim, num_lstms)
    x = jax.random.normal(kx, (seq_len, batch, input_size), jnp.float32)
    h0 = jax.random.normal(kh, (num_lstms, batch, hidden_dim), jnp.float32)
    c0 = jax.random.normal(kc, (num_lstms, batch, hidden_dim), jnp.float32)

    fwd = jax.jit(encoder_forward)
    out, (h_n, c_n) = fwd(x, (h0, c0), params)
    jax.block_until_ready(out)
    jax.block_until_ready(h_n)
    jax.block_until_ready(c_n)

    out_r, (h_r, c_r) = encoder_reference(x, (h0, c0), params)
    np.testing.assert_allclose(np.asarray(out), np.asarray(out_r), atol=1e-4, rtol=1e-4)
    np.testing.assert_allclose(np.asarray(h_n), np.asarray(h_r), atol=1e-4, rtol=1e-4)
    np.testing.assert_allclose(np.asarray(c_n), np.asarray(c_r), atol=1e-4, rtol=1e-4)

    print("KERNEL_OK")
</pallas_src>

<mosaic_0001>
module attributes {stable_mosaic.version = 11 : i64} {
  func.func @mlp_proj_kernel(%arg0: i32, %arg1: memref<8x16xf32, #tpu.memory_space<vmem>>, %arg2: memref<16x32xf32, #tpu.memory_space<vmem>>, %arg3: memref<1x32xf32, #tpu.memory_space<vmem>>, %arg4: memref<32x16xf32, #tpu.memory_space<vmem>>, %arg5: memref<1x16xf32, #tpu.memory_space<vmem>>, %arg6: memref<16x128xf32, #tpu.memory_space<vmem>>, %arg7: memref<1x128xf32, #tpu.memory_space<vmem>>, %arg8: memref<8x128xf32, #tpu.memory_space<vmem>>) attributes {dimension_semantics = [#tpu.dimension_semantics<parallel>], iteration_bounds = array<i64: 2>, scalar_prefetch = 0 : i64, scratch_operands = 0 : i64, tpu.core_type = #tpu.core_type<tc>, window_params = [{transform_indices = @transform_0, window_bounds = array<i64: 8, 16>}, {pipeline_mode = #tpu.pipeline_mode<synchronous>, transform_indices = @transform_1, window_bounds = array<i64: 16, 32>}, {pipeline_mode = #tpu.pipeline_mode<synchronous>, transform_indices = @transform_2, window_bounds = array<i64: 1, 32>}, {pipeline_mode = #tpu.pipeline_mode<synchronous>, transform_indices = @transform_3, window_bounds = array<i64: 32, 16>}, {pipeline_mode = #tpu.pipeline_mode<synchronous>, transform_indices = @transform_4, window_bounds = array<i64: 1, 16>}, {pipeline_mode = #tpu.pipeline_mode<synchronous>, transform_indices = @transform_5, window_bounds = array<i64: 16, 128>}, {pipeline_mode = #tpu.pipeline_mode<synchronous>, transform_indices = @transform_6, window_bounds = array<i64: 1, 128>}, {transform_indices = @transform_7, window_bounds = array<i64: 8, 128>}]} {
    %c0 = arith.constant 0 : index
    %c0_0 = arith.constant 0 : index
    %0 = vector.load %arg1[%c0, %c0_0] : memref<8x16xf32, #tpu.memory_space<vmem>>, vector<8x16xf32>
    %c0_1 = arith.constant 0 : index
    %c0_2 = arith.constant 0 : index
    %1 = vector.load %arg2[%c0_1, %c0_2] : memref<16x32xf32, #tpu.memory_space<vmem>>, vector<16x32xf32>
    %cst = arith.constant dense<0.000000e+00> : vector<8x32xf32>
    %2 = tpu.matmul %0, %1, %cst {dimension_numbers = #tpu.dot_dimension_numbers<[1], [0], [0], [1], [0, 0, 1, 1], [], []>} : vector<8x16xf32>, vector<16x32xf32>, vector<8x32xf32> -> vector<8x32xf32>
    %c0_3 = arith.constant 0 : index
    %c0_4 = arith.constant 0 : index
    %3 = vector.load %arg3[%c0_3, %c0_4] : memref<1x32xf32, #tpu.memory_space<vmem>>, vector<1x32xf32>
    %4 = vector.broadcast %3 : vector<1x32xf32> to vector<8x32xf32>
    %5 = arith.addf %2, %4 : vector<8x32xf32>
    %cst_5 = arith.constant 0.000000e+00 : f32
    %6 = vector.broadcast %cst_5 : f32 to vector<8x32xf32>
    %7 = arith.maximumf %5, %6 : vector<8x32xf32>
    %c0_6 = arith.constant 0 : index
    %c0_7 = arith.constant 0 : index
    %8 = vector.load %arg4[%c0_6, %c0_7] : memref<32x16xf32, #tpu.memory_space<vmem>>, vector<32x16xf32>
    %cst_8 = arith.constant dense<0.000000e+00> : vector<8x16xf32>
    %9 = tpu.matmul %7, %8, %cst_8 {dimension_numbers = #tpu.dot_dimension_numbers<[1], [0], [0], [1], [0, 0, 1, 1], [], []>} : vector<8x32xf32>, vector<32x16xf32>, vector<8x16xf32> -> vector<8x16xf32>
    %c0_9 = arith.constant 0 : index
    %c0_10 = arith.constant 0 : index
    %10 = vector.load %arg5[%c0_9, %c0_10] : memref<1x16xf32, #tpu.memory_space<vmem>>, vector<1x16xf32>
    %11 = vector.broadcast %10 : vector<1x16xf32> to vector<8x16xf32>
    %12 = arith.addf %9, %11 : vector<8x16xf32>
    %cst_11 = arith.constant 0.000000e+00 : f32
    %13 = vector.broadcast %cst_11 : f32 to vector<8x16xf32>
    %14 = arith.maximumf %12, %13 : vector<8x16xf32>
    %c0_12 = arith.constant 0 : index
    %c0_13 = arith.constant 0 : index
    %15 = vector.load %arg6[%c0_12, %c0_13] : memref<16x128xf32, #tpu.memory_space<vmem>>, vector<16x128xf32>
    %cst_14 = arith.constant dense<0.000000e+00> : vector<8x128xf32>
    %16 = tpu.matmul %14, %15, %cst_14 {dimension_numbers = #tpu.dot_dimension_numbers<[1], [0], [0], [1], [0, 0, 1, 1], [], []>} : vector<8x16xf32>, vector<16x128xf32>, vector<8x128xf32> -> vector<8x128xf32>
    %c0_15 = arith.constant 0 : index
    %c0_16 = arith.constant 0 : index
    %17 = vector.load %arg7[%c0_15, %c0_16] : memref<1x128xf32, #tpu.memory_space<vmem>>, vector<1x128xf32>
    %18 = vector.broadcast %17 : vector<1x128xf32> to vector<8x128xf32>
    %19 = arith.addf %16, %18 : vector<8x128xf32>
    %c0_17 = arith.constant 0 : index
    %c0_18 = arith.constant 0 : index
    %20 = vector.load %arg8[%c0_17, %c0_18] : memref<8x128xf32, #tpu.memory_space<vmem>>, vector<8x128xf32>
    tpu.vector_store %arg8[%c0_17, %c0_18], %19 {strides = array<i32>} : memref<8x128xf32, #tpu.memory_space<vmem>>, vector<8x128xf32>,
    return
  }
  func.func @transform_0(%arg0: i32) -> (i32, i32) {
    %c0_i32 = arith.constant 0 : i32
    %c0_i32_0 = arith.constant 0 : i32
    return %arg0, %c0_i32 : i32, i32
  }
  func.func @transform_1(%arg0: i32) -> (i32, i32) {
    %c0_i32 = arith.constant 0 : i32
    %c0_i32_0 = arith.constant 0 : i32
    %c0_i32_1 = arith.constant 0 : i32
    return %c0_i32, %c0_i32_0 : i32, i32
  }
  func.func @transform_2(%arg0: i32) -> (i32, i32) {
    %c0_i32 = arith.constant 0 : i32
    %c0_i32_0 = arith.constant 0 : i32
    %c0_i32_1 = arith.constant 0 : i32
    return %c0_i32, %c0_i32_0 : i32, i32
  }
  func.func @transform_3(%arg0: i32) -> (i32, i32) {
    %c0_i32 = arith.constant 0 : i32
    %c0_i32_0 = arith.constant 0 : i32
    %c0_i32_1 = arith.constant 0 : i32
    return %c0_i32, %c0_i32_0 : i32, i32
  }
  func.func @transform_4(%arg0: i32) -> (i32, i32) {
    %c0_i32 = arith.constant 0 : i32
    %c0_i32_0 = arith.constant 0 : i32
    %c0_i32_1 = arith.constant 0 : i32
    return %c0_i32, %c0_i32_0 : i32, i32
  }
  func.func @transform_5(%arg0: i32) -> (i32, i32) {
    %c0_i32 = arith.constant 0 : i32
    %c0_i32_0 = arith.constant 0 : i32
    %c0_i32_1 = arith.constant 0 : i32
    return %c0_i32, %c0_i32_0 : i32, i32
  }
  func.func @transform_6(%arg0: i32) -> (i32, i32) {
    %c0_i32 = arith.constant 0 : i32
    %c0_i32_0 = arith.constant 0 : i32
    %c0_i32_1 = arith.constant 0 : i32
    return %c0_i32, %c0_i32_0 : i32, i32
  }
  func.func @transform_7(%arg0: i32) -> (i32, i32) {
    %c0_i32 = arith.constant 0 : i32
    %c0_i32_0 = arith.constant 0 : i32
    return %arg0, %c0_i32 : i32, i32
  }
}

module attributes {stable_mosaic.version = 11 : i64} {
  func.func @kernel(%arg0: i32, %arg1: memref<8x2x128xf32, #tpu.memory_space<vmem>>, %arg2: memref<2x32x128xf32, #tpu.memory_space<vmem>>, %arg3: memref<1x32x128xf32, #tpu.memory_space<vmem>>, %arg4: memref<1x1x128xf32, #tpu.memory_space<vmem>>, %arg5: memref<2x2x32xf32, #tpu.memory_space<vmem>>, %arg6: memref<2x2x32xf32, #tpu.memory_space<vmem>>, %arg7: memref<8x2x32xf32, #tpu.memory_space<vmem>>, %arg8: memref<2x2x32xf32, #tpu.memory_space<vmem>>, %arg9: memref<2x2x32xf32, #tpu.memory_space<vmem>>, %arg10: memref<2x2x32xf32, #tpu.memory_space<vmem>>, %arg11: memref<2x2x32xf32, #tpu.memory_space<vmem>>) attributes {dimension_semantics = [#tpu.dimension_semantics<arbitrary>], iteration_bounds = array<i64: 8>, scalar_prefetch = 0 : i64, scratch_operands = 2 : i64, tpu.core_type = #tpu.core_type<tc>, window_params = [{pipeline_mode = #tpu.pipeline_mode<synchronous>, transform_indices = @transform_0, window_bounds = array<i64: 8, 2, 128>}, {pipeline_mode = #tpu.pipeline_mode<synchronous>, transform_indices = @transform_1, window_bounds = array<i64: 2, 32, 128>}, {pipeline_mode = #tpu.pipeline_mode<synchronous>, transform_indices = @transform_2, window_bounds = array<i64: 1, 32, 128>}, {pipeline_mode = #tpu.pipeline_mode<synchronous>, transform_indices = @transform_3, window_bounds = array<i64: 1, 1, 128>}, {pipeline_mode = #tpu.pipeline_mode<synchronous>, transform_indices = @transform_4, window_bounds = array<i64: 2, 2, 32>}, {pipeline_mode = #tpu.pipeline_mode<synchronous>, transform_indices = @transform_5, window_bounds = array<i64: 2, 2, 32>}, {pipeline_mode = #tpu.pipeline_mode<synchronous>, transform_indices = @transform_6, window_bounds = array<i64: 8, 2, 32>}, {pipeline_mode = #tpu.pipeline_mode<synchronous>, transform_indices = @transform_7, window_bounds = array<i64: 2, 2, 32>}, {pipeline_mode = #tpu.pipeline_mode<synchronous>, transform_indices = @transform_8, window_bounds = array<i64: 2, 2, 32>}]} {
    %c0_i32 = arith.constant 0 : i32
    %0 = arith.cmpi eq, %arg0, %c0_i32 : i32
    %1 = arith.extui %0 : i1 to i32
    %c0_i32_0 = arith.constant 0 : i32
    %2 = arith.cmpi ne, %1, %c0_i32_0 : i32
    scf.if %2 {
      %c0_44 = arith.constant 0 : index
      %c0_45 = arith.constant 0 : index
      %c0_46 = arith.constant 0 : index
      %78 = vector.load %arg5[%c0_44, %c0_45, %c0_46] : memref<2x2x32xf32, #tpu.memory_space<vmem>>, vector<2x2x32xf32>
      %c0_47 = arith.constant 0 : index
      %c0_48 = arith.constant 0 : index
      %c0_49 = arith.constant 0 : index
      %79 = vector.load %arg10[%c0_47, %c0_48, %c0_49] : memref<2x2x32xf32, #tpu.memory_space<vmem>>, vector<2x2x32xf32>
      tpu.vector_store %arg10[%c0_47, %c0_48, %c0_49], %78 {strides = array<i32>} : memref<2x2x32xf32, #tpu.memory_space<vmem>>, vector<2x2x32xf32>,
      %c0_50 = arith.constant 0 : index
      %c0_51 = arith.constant 0 : index
      %c0_52 = arith.constant 0 : index
      %80 = vector.load %arg6[%c0_50, %c0_51, %c0_52] : memref<2x2x32xf32, #tpu.memory_space<vmem>>, vector<2x2x32xf32>
      %c0_53 = arith.constant 0 : index
      %c0_54 = arith.constant 0 : index
      %c0_55 = arith.constant 0 : index
      %81 = vector.load %arg11[%c0_53, %c0_54, %c0_55] : memref<2x2x32xf32, #tpu.memory_space<vmem>>, vector<2x2x32xf32>
      tpu.vector_store %arg11[%c0_53, %c0_54, %c0_55], %80 {strides = array<i32>} : memref<2x2x32xf32, #tpu.memory_space<vmem>>, vector<2x2x32xf32>,
    } else {
    }
    %3 = arith.index_cast %arg0 : i32 to index
    %c0 = arith.constant 0 : index
    %c0_1 = arith.constant 0 : index
    %4 = vector.load %arg1[%3, %c0, %c0_1] : memref<8x2x128xf32, #tpu.memory_space<vmem>>, vector<1x2x128xf32>
    %5 = vector.shape_cast %4 : vector<1x2x128xf32> to vector<2x128xf32>
    %c0_2 = arith.constant 0 : index
    %c0_3 = arith.constant 0 : index
    %c0_4 = arith.constant 0 : index
    %6 = vector.load %arg10[%c0_2, %c0_3, %c0_4] : memref<2x2x32xf32, #tpu.memory_space<vmem>>, vector<1x2x32xf32>
    %7 = vector.shape_cast %6 : vector<1x2x32xf32> to vector<2x32xf32>
    %c0_5 = arith.constant 0 : index
    %c0_6 = arith.constant 0 : index
    %c0_7 = arith.constant 0 : index
    %8 = vector.load %arg11[%c0_5, %c0_6, %c0_7] : memref<2x2x32xf32, #tpu.memory_space<vmem>>, vector<1x2x32xf32>
    %9 = vector.shape_cast %8 : vector<1x2x32xf32> to vector<2x32xf32>
    %c0_8 = arith.constant 0 : index
    %c0_9 = arith.constant 0 : index
    %c0_10 = arith.constant 0 : index
    %10 = vector.load %arg2[%c0_8, %c0_9, %c0_10] : memref<2x32x128xf32, #tpu.memory_space<vmem>>, vector<1x32x128xf32>
    %11 = vector.shape_cast %10 : vector<1x32x128xf32> to vector<32x128xf32>
    %cst = arith.constant dense<0.000000e+00> : vector<2x128xf32>
    %12 = tpu.matmul %7, %11, %cst {dimension_numbers = #tpu.dot_dimension_numbers<[1], [0], [0], [1], [0, 0, 1, 1], [], []>} : vector<2x32xf32>, vector<32x128xf32>, vector<2x128xf32> -> vector<2x128xf32>
    %13 = arith.addf %5, %12 : vector<2x128xf32>
    %14 = arith.negf %13 : vector<2x128xf32>
    %15 = math.exp %14 : vector<2x128xf32>
    %cst_11 = arith.constant 1.000000e+00 : f32
    %16 = vector.broadcast %cst_11 : f32 to vector<2x128xf32>
    %17 = arith.addf %16, %15 : vector<2x128xf32>
    %18 = arith.divf %16, %17 : vector<2x128xf32>
    %19 = math.tanh %13 : vector<2x128xf32>
    %20 = vector.extract_strided_slice %18 {offsets = [0, 0], sizes = [2, 32], strides = [1, 1]} : vector<2x128xf32> to vector<2x32xf32>
    %21 = vector.extract_strided_slice %18 {offsets = [0, 32], sizes = [2, 32], strides = [1, 1]} : vector<2x128xf32> to vector<2x32xf32>
    %22 = vector.extract_strided_slice %19 {offsets = [0, 64], sizes = [2, 32], strides = [1, 1]} : vector<2x128xf32> to vector<2x32xf32>
    %23 = vector.extract_strided_slice %18 {offsets = [0, 96], sizes = [2, 32], strides = [1, 1]} : vector<2x128xf32> to vector<2x32xf32>
    %24 = arith.mulf %21, %9 : vector<2x32xf32>
    %25 = arith.mulf %20, %22 : vector<2x32xf32>
    %26 = arith.addf %24, %25 : vector<2x32xf32>
    %27 = math.tanh %26 : vector<2x32xf32>
    %28 = arith.mulf %23, %27 : vector<2x32xf32>
    %c0_12 = arith.constant 0 : index
    %c0_13 = arith.constant 0 : index
    %c0_14 = arith.constant 0 : index
    %29 = vector.load %arg10[%c0_12, %c0_13, %c0_14] : memref<2x2x32xf32, #tpu.memory_space<vmem>>, vector<1x2x32xf32>
    %30 = vector.shape_cast %29 : vector<1x2x32xf32> to vector<2x32xf32>
    %31 = vector.shape_cast %28 : vector<2x32xf32> to vector<1x2x32xf32>
    tpu.vector_store %arg10[%c0_12, %c0_13, %c0_14], %31 {strides = array<i32>} : memref<2x2x32xf32, #tpu.memory_space<vmem>>, vector<1x2x32xf32>,
    %c0_15 = arith.constant 0 : index
    %c0_16 = arith.constant 0 : index
    %c0_17 = arith.constant 0 : index
    %32 = vector.load %arg11[%c0_15, %c0_16, %c0_17] : memref<2x2x32xf32, #tpu.memory_space<vmem>>, vector<1x2x32xf32>
    %33 = vector.shape_cast %32 : vector<1x2x32xf32> to vector<2x32xf32>
    %34 = vector.shape_cast %26 : vector<2x32xf32> to vector<1x2x32xf32>
    tpu.vector_store %arg11[%c0_15, %c0_16, %c0_17], %34 {strides = array<i32>} : memref<2x2x32xf32, #tpu.memory_space<vmem>>, vector<1x2x32xf32>,
    %c1 = arith.constant 1 : index
    %c0_18 = arith.constant 0 : index
    %c0_19 = arith.constant 0 : index
    %35 = vector.load %arg10[%c1, %c0_18, %c0_19] : memref<2x2x32xf32, #tpu.memory_space<vmem>>, vector<1x2x32xf32>
    %36 = vector.shape_cast %35 : vector<1x2x32xf32> to vector<2x32xf32>
    %c1_20 = arith.constant 1 : index
    %c0_21 = arith.constant 0 : index
    %c0_22 = arith.constant 0 : index
    %37 = vector.load %arg11[%c1_20, %c0_21, %c0_22] : memref<2x2x32xf32, #tpu.memory_space<vmem>>, vector<1x2x32xf32>
    %38 = vector.shape_cast %37 : vector<1x2x32xf32> to vector<2x32xf32>
    %c0_23 = arith.constant 0 : index
    %c0_24 = arith.constant 0 : index
    %c0_25 = arith.constant 0 : index
    %39 = vector.load %arg3[%c0_23, %c0_24, %c0_25] : memref<1x32x128xf32, #tpu.memory_space<vmem>>, vector<1x32x128xf32>
    %40 = vector.shape_cast %39 : vector<1x32x128xf32> to vector<32x128xf32>
    %cst_26 = arith.constant dense<0.000000e+00> : vector<2x128xf32>
    %41 = tpu.matmul %28, %40, %cst_26 {dimension_numbers = #tpu.dot_dimension_numbers<[1], [0], [0], [1], [0, 0, 1, 1], [], []>} : vector<2x32xf32>, vector<32x128xf32>, vector<2x128xf32> -> vector<2x128xf32>
    %c0_27 = arith.constant 0 : index
    %c0_28 = arith.constant 0 : index
    %c0_29 = arith.constant 0 : index
    %42 = vector.load %arg4[%c0_27, %c0_28, %c0_29] : memref<1x1x128xf32, #tpu.memory_space<vmem>>, vector<1x1x128xf32>
    %43 = vector.shape_cast %42 : vector<1x1x128xf32> to vector<1x128xf32>
    %44 = vector.broadcast %43 : vector<1x128xf32> to vector<2x128xf32>
    %45 = arith.addf %41, %44 : vector<2x128xf32>
    %c1_30 = arith.constant 1 : index
    %c0_31 = arith.constant 0 : index
    %c0_32 = arith.constant 0 : index
    %46 = vector.load %arg2[%c1_30, %c0_31, %c0_32] : memref<2x32x128xf32, #tpu.memory_space<vmem>>, vector<1x32x128xf32>
    %47 = vector.shape_cast %46 : vector<1x32x128xf32> to vector<32x128xf32>
    %cst_33 = arith.constant dense<0.000000e+00> : vector<2x128xf32>
    %48 = tpu.matmul %36, %47, %cst_33 {dimension_numbers = #tpu.dot_dimension_numbers<[1], [0], [0], [1], [0, 0, 1, 1], [], []>} : vector<2x32xf32>, vector<32x128xf32>, vector<2x128xf32> -> vector<2x128xf32>
    %49 = arith.addf %45, %48 : vector<2x128xf32>
    %50 = arith.negf %49 : vector<2x128xf32>
    %51 = math.exp %50 : vector<2x128xf32>
    %cst_34 = arith.constant 1.000000e+00 : f32
    %52 = vector.broadcast %cst_34 : f32 to vector<2x128xf32>
    %53 = arith.addf %52, %51 : vector<2x128xf32>
    %54 = arith.divf %52, %53 : vector<2x128xf32>
    %55 = math.tanh %49 : vector<2x128xf32>
    %56 = vector.extract_strided_slice %54 {offsets = [0, 0], sizes = [2, 32], strides = [1, 1]} : vector<2x128xf32> to vector<2x32xf32>
    %57 = vector.extract_strided_slice %54 {offsets = [0, 32], sizes = [2, 32], strides = [1, 1]} : vector<2x128xf32> to vector<2x32xf32>
    %58 = vector.extract_strided_slice %55 {offsets = [0, 64], sizes = [2, 32], strides = [1, 1]} : vector<2x128xf32> to vector<2x32xf32>
    %59 = vector.extract_strided_slice %54 {offsets = [0, 96], sizes = [2, 32], strides = [1, 1]} : vector<2x128xf32> to vector<2x32xf32>
    %60 = arith.mulf %57, %38 : vector<2x32xf32>
    %61 = arith.mulf %56, %58 : vector<2x32xf32>
    %62 = arith.addf %60, %61 : vector<2x32xf32>
    %63 = math.tanh %62 : vector<2x32xf32>
    %64 = arith.mulf %59, %63 : vector<2x32xf32>
    %c1_35 = arith.constant 1 : index
    %c0_36 = arith.constant 0 : index
    %c0_37 = arith.constant 0 : index
    %65 = vector.load %arg10[%c1_35, %c0_36, %c0_37] : memref<2x2x32xf32, #tpu.memory_space<vmem>>, vector<1x2x32xf32>
    %66 = vector.shape_cast %65 : vector<1x2x32xf32> to vector<2x32xf32>
    %67 = vector.shape_cast %64 : vector<2x32xf32> to vector<1x2x32xf32>
    tpu.vector_store %arg10[%c1_35, %c0_36, %c0_37], %67 {strides = array<i32>} : memref<2x2x32xf32, #tpu.memory_space<vmem>>, vector<1x2x32xf32>,
    %c1_38 = arith.constant 1 : index
    %c0_39 = arith.constant 0 : index
    %c0_40 = arith.constant 0 : index
    %68 = vector.load %arg11[%c1_38, %c0_39, %c0_40] : memref<2x2x32xf32, #tpu.memory_space<vmem>>, vector<1x2x32xf32>
    %69 = vector.shape_cast %68 : vector<1x2x32xf32> to vector<2x32xf32>
    %70 = vector.shape_cast %62 : vector<2x32xf32> to vector<1x2x32xf32>
    tpu.vector_store %arg11[%c1_38, %c0_39, %c0_40], %70 {strides = array<i32>} : memref<2x2x32xf32, #tpu.memory_space<vmem>>, vector<1x2x32xf32>,
    %71 = arith.index_cast %arg0 : i32 to index
    %c0_41 = arith.constant 0 : index
    %c0_42 = arith.constant 0 : index
    %72 = vector.load %arg7[%71, %c0_41, %c0_42] : memref<8x2x32xf32, #tpu.memory_space<vmem>>, vector<1x2x32xf32>
    %73 = vector.shape_cast %72 : vector<1x2x32xf32> to vector<2x32xf32>
    %74 = vector.shape_cast %64 : vector<2x32xf32> to vector<1x2x32xf32>
    tpu.vector_store %arg7[%71, %c0_41, %c0_42], %74 {strides = array<i32>} : memref<8x2x32xf32, #tpu.memory_space<vmem>>, vector<1x2x32xf32>,
    %c7_i32 = arith.constant 7 : i32
    %75 = arith.cmpi eq, %arg0, %c7_i32 : i32
    %76 = arith.extui %75 : i1 to i32
    %c0_i32_43 = arith.constant 0 : i32
    %77 = arith.cmpi ne, %76, %c0_i32_43 : i32
    scf.if %77 {
      %c0_44 = arith.constant 0 : index
      %c0_45 = arith.constant 0 : index
      %c0_46 = arith.constant 0 : index
      %78 = vector.load %arg10[%c0_44, %c0_45, %c0_46] : memref<2x2x32xf32, #tpu.memory_space<vmem>>, vector<2x2x32xf32>
      %c0_47 = arith.constant 0 : index
      %c0_48 = arith.constant 0 : index
      %c0_49 = arith.constant 0 : index
      %79 = vector.load %arg8[%c0_47, %c0_48, %c0_49] : memref<2x2x32xf32, #tpu.memory_space<vmem>>, vector<2x2x32xf32>
      tpu.vector_store %arg8[%c0_47, %c0_48, %c0_49], %78 {strides = array<i32>} : memref<2x2x32xf32, #tpu.memory_space<vmem>>, vector<2x2x32xf32>,
      %c0_50 = arith.constant 0 : index
      %c0_51 = arith.constant 0 : index
      %c0_52 = arith.constant 0 : index
      %80 = vector.load %arg11[%c0_50, %c0_51, %c0_52] : memref<2x2x32xf32, #tpu.memory_space<vmem>>, vector<2x2x32xf32>
      %c0_53 = arith.constant 0 : index
      %c0_54 = arith.constant 0 : index
      %c0_55 = arith.constant 0 : index
      %81 = vector.load %arg9[%c0_53, %c0_54, %c0_55] : memref<2x2x32xf32, #tpu.memory_space<vmem>>, vector<2x2x32xf32>
      tpu.vector_store %arg9[%c0_53, %c0_54, %c0_55], %80 {strides = array<i32>} : memref<2x2x32xf32, #tpu.memory_space<vmem>>, vector<2x2x32xf32>,
    } else {
    }
    return
  }
  func.func @transform_0(%arg0: i32) -> (i32, i32, i32) {
    %c0_i32 = arith.constant 0 : i32
    %c0_i32_0 = arith.constant 0 : i32
    %c0_i32_1 = arith.constant 0 : i32
    %c0_i32_2 = arith.constant 0 : i32
    return %c0_i32, %c0_i32_0, %c0_i32_1 : i32, i32, i32
  }
  func.func @transform_1(%arg0: i32) -> (i32, i32, i32) {
    %c0_i32 = arith.constant 0 : i32
    %c0_i32_0 = arith.constant 0 : i32
    %c0_i32_1 = arith.constant 0 : i32
    %c0_i32_2 = arith.constant 0 : i32
    return %c0_i32, %c0_i32_0, %c0_i32_1 : i32, i32, i32
  }
  func.func @transform_2(%arg0: i32) -> (i32, i32, i32) {
    %c0_i32 = arith.constant 0 : i32
    %c0_i32_0 = arith.constant 0 : i32
    %c0_i32_1 = arith.constant 0 : i32
    %c0_i32_2 = arith.constant 0 : i32
    return %c0_i32, %c0_i32_0, %c0_i32_1 : i32, i32, i32
  }
  func.func @transform_3(%arg0: i32) -> (i32, i32, i32) {
    %c0_i32 = arith.constant 0 : i32
    %c0_i32_0 = arith.constant 0 : i32
    %c0_i32_1 = arith.constant 0 : i32
    %c0_i32_2 = arith.constant 0 : i32
    return %c0_i32, %c0_i32_0, %c0_i32_1 : i32, i32, i32
  }
  func.func @transform_4(%arg0: i32) -> (i32, i32, i32) {
    %c0_i32 = arith.constant 0 : i32
    %c0_i32_0 = arith.constant 0 : i32
    %c0_i32_1 = arith.constant 0 : i32
    %c0_i32_2 = arith.constant 0 : i32
    return %c0_i32, %c0_i32_0, %c0_i32_1 : i32, i32, i32
  }
  func.func @transform_5(%arg0: i32) -> (i32, i32, i32) {
    %c0_i32 = arith.constant 0 : i32
    %c0_i32_0 = arith.constant 0 : i32
    %c0_i32_1 = arith.constant 0 : i32
    %c0_i32_2 = arith.constant 0 : i32
    return %c0_i32, %c0_i32_0, %c0_i32_1 : i32, i32, i32
  }
  func.func @transform_6(%arg0: i32) -> (i32, i32, i32) {
    %c0_i32 = arith.constant 0 : i32
    %c0_i32_0 = arith.constant 0 : i32
    %c0_i32_1 = arith.constant 0 : i32
    %c0_i32_2 = arith.constant 0 : i32
    return %c0_i32, %c0_i32_0, %c0_i32_1 : i32, i32, i32
  }
  func.func @transform_7(%arg0: i32) -> (i32, i32, i32) {
    %c0_i32 = arith.constant 0 : i32
    %c0_i32_0 = arith.constant 0 : i32
    %c0_i32_1 = arith.constant 0 : i32
    %c0_i32_2 = arith.constant 0 : i32
    return %c0_i32, %c0_i32_0, %c0_i32_1 : i32, i32, i32
  }
  func.func @transform_8(%arg0: i32) -> (i32, i32, i32) {
    %c0_i32 = arith.constant 0 : i32
    %c0_i32_0 = arith.constant 0 : i32
    %c0_i32_1 = arith.constant 0 : i32
    %c0_i32_2 = arith.constant 0 : i32
    return %c0_i32, %c0_i32_0, %c0_i32_1 : i32, i32, i32
  }
}

</mosaic_0001>

<llo_original>
// kernel: encoder_forward.2
$region0: #{encoder_forward.2}
  #allocation0 [shape = 'u32[]', space=smem, size = 0x4, offset = 0x4, fixed_abs, tag = 'smem constant byte address 0x4 - core index']
  #allocation1 [shape = 'u32[72,128]{1,0:T(1,128)}', space=vmem, size = 0x9000, scoped, tag = 'internal scratch']
  %s0 = inlined_call_operand.hbm [shape: f32[16,16], index: 0, kind: input, shape index: {}]
  %s1 = inlined_call_operand.hbm [shape: f32[16,32], index: 1, kind: input, shape index: {}]
  %s2 = inlined_call_operand.hbm [shape: f32[1,32], index: 2, kind: input, shape index: {}]
  %s3 = inlined_call_operand.vmem [shape: f32[32,16], index: 3, kind: input, shape index: {}]
  %s4 = inlined_call_operand.hbm [shape: f32[1,16], index: 4, kind: input, shape index: {}]
  %s5 = inlined_call_operand.hbm [shape: f32[16,128], index: 5, kind: input, shape index: {}]
  %s6 = inlined_call_operand.vmem [shape: f32[1,128], index: 6, kind: input, shape index: {}]
  %s7 = inlined_call_operand.vmem [shape: f32[16,128], index: 7, kind: output, shape index: {}]
  %s8 = sld [smem:[#allocation0]]
  $region81: #{encoder_forward.2} parent=0
    _
  %s10 = ssub.s32 1, %s8
  %s11 = scalar_select 0, %s10, %s8
  $region1: #{encoder_forward.2} parent=0
    #allocation2 [shape = 'u8[8192]{0}', space=vmem, size = 0x2000, scoped, tag = 'input window, operand 0']
    #allocation3 [shape = 's32[2]{0}', space=sflag, size = 0x8, scoped, tag = 'scoped memory for encoder_forward.2']
    #allocation4 [shape = 'u8[8192]{0}', space=vmem, size = 0x2000, scoped, tag = 'input window, operand 1, single buffered']
    #allocation5 [shape = 's32[1]{0}', space=sflag, size = 0x4, scoped, tag = 'scoped memory for encoder_forward.2']
    #allocation6 [shape = 'u8[512]{0}', space=vmem, size = 0x400, scoped, tag = 'input window, operand 2, single buffered']
    #allocation7 [shape = 'u8[512]{0}', space=vmem, size = 0x400, scoped, tag = 'input window, operand 4, single buffered']
    #allocation8 [shape = 's32[1]{0}', space=sflag, size = 0x4, scoped, tag = 'scoped memory for encoder_forward.2']
    #allocation9 [shape = 'u8[8192]{0}', space=vmem, size = 0x2000, scoped, tag = 'input window, operand 5, single buffered']
    %12 = vsyncpa [#allocation3], 0
    %s13 = scalar_lea.sflag [#allocation3], 1
    %14 = vsyncpa %s13, 0
    %15 = vsyncpa [#allocation5], 0
    %16 = vsyncpa [#allocation8], 0
    loop: start=0, step=1, limit=4
    $region2: #{encoder_forward.2} parent=1 // loop_pre_header
      _
    $region3: #{encoder_forward.2} parent=1 // loop_header
      %s18 = sphi 0, %s22
      %p19 = scmp.ge.s32.totalorder %s18, 4
      %s28 = sphi 0, %s30
      %s31 = sphi 0, %s28
      %s32 = sphi 0, %s31
      %s48 = sphi 0, %s32
      %s52 = sphi 0, %s52
      %s54 = sphi 0, %s52
      %s55 = sphi 0, %s54
      %s69 = sphi 0, %s55
      %s73 = sphi 0, %s73
      %s75 = sphi 0, %s73
      %s76 = sphi 0, %s75
      %s90 = sphi 0, %s76
      %s94 = sphi 0, %s94
      %s96 = sphi 0, %s94
      %s97 = sphi 0, %s96
      %s111 = sphi 0, %s97
      %s115 = sphi 0, %s115
      %s117 = sphi 0, %s115
      %s118 = sphi 0, %s117
      %s132 = sphi 0, %s118
      %s136 = sphi 0, %s136
      %s138 = sphi 0, %s136
      %s139 = sphi 0, %s138
      %s153 = sphi 0, %s139
      %s157 = sphi 0, %s157
      %s159 = sphi 0, %s157
      %s160 = sphi 0, %s159
      %s174 = sphi 0, %s160
      %s180 = sphi 0, %s182
      %s183 = sphi 0, %s180
      %s184 = sphi 0, %s183
      %s200 = sphi 0, %s184
    $region4: #{encoder_forward.2} parent=1 // loop_header_branch
      %21 = sbr.rel (%p19) target = $region8
    $region5: #{encoder_forward.2} parent=1 // loop_body
      %s23 = ssub.s32 %s18, 1
      %s24 = ssub.s32 %s18, 2
      %s25 = sadd.s32 %s18, 1
      %s26 = ssub.s32 %s18, %s25
      %p27 = scmp.eq.s32.totalorder %s26, 0
      %s29 = sadd.s32 %s28, 1
      %s30 = scalar_select %p27, %s28, %s29
      %p33 = pneg %p27
      %p34 = scmp.eq.s32.totalorder %s18, 1
      %p35 = por %p33, %p34
      %p36 = scmp.ne.s32.totalorder %s28, %s31
      %p37 = scmp.eq.s32.totalorder %s18, 0
      %p38 = por %p36, %p37
      %p39 = scmp.ne.s32.totalorder %s28, %s31
      %p40 = scmp.eq.s32.totalorder %s23, 1
      %p41 = por %p39, %p40
      %p42 = scmp.ne.s32.totalorder %s31, %s32
      %p43 = scmp.eq.s32.totalorder %s23, 0
      %p44 = por %p42, %p43
      %p45 = scmp.ne.s32.totalorder %s31, %s32
      %p46 = scmp.eq.s32.totalorder %s24, 1
      %p47 = por %p45, %p46
      %p49 = scmp.ne.s32.totalorder %s32, %s48
      %p50 = scmp.eq.s32.totalorder %s24, 0
      %p51 = por %p49, %p50
      %s53 = sadd.s32 %s52, 1
      %p56 = scmp.eq.s32.totalorder %s18, 1
      %p57 = scmp.ne.s32.totalorder %s52, %s54
      %p58 = scmp.eq.s32.totalorder %s18, 0
      %p59 = por %p57, %p58
      %p60 = scmp.ne.s32.totalorder %s52, %s54
      %p61 = scmp.eq.s32.totalorder %s23, 1
      %p62 = por %p60, %p61
      %p63 = scmp.ne.s32.totalorder %s54, %s55
      %p64 = scmp.eq.s32.totalorder %s23, 0
      %p65 = por %p63, %p64
      %p66 = scmp.ne.s32.totalorder %s54, %s55
      %p67 = scmp.eq.s32.totalorder %s24, 1
      %p68 = por %p66, %p67
      %p70 = scmp.ne.s32.totalorder %s55, %s69
      %p71 = scmp.eq.s32.totalorder %s24, 0
      %p72 = por %p70, %p71
      %s74 = sadd.s32 %s73, 1
      %p77 = scmp.eq.s32.totalorder %s18, 1
      %p78 = scmp.ne.s32.totalorder %s73, %s75
      %p79 = scmp.eq.s32.totalorder %s18, 0
      %p80 = por %p78, %p79
      %p81 = scmp.ne.s32.totalorder %s73, %s75
      %p82 = scmp.eq.s32.totalorder %s23, 1
      %p83 = por %p81, %p82
      %p84 = scmp.ne.s32.totalorder %s75, %s76
      %p85 = scmp.eq.s32.totalorder %s23, 0
      %p86 = por %p84, %p85
      %p87 = scmp.ne.s32.totalorder %s75, %s76
      %p88 = scmp.eq.s32.totalorder %s24, 1
      %p89 = por %p87, %p88
      %p91 = scmp.ne.s32.totalorder %s76, %s90
      %p92 = scmp.eq.s32.totalorder %s24, 0
      %p93 = por %p91, %p92
      %s95 = sadd.s32 %s94, 1
      %p98 = scmp.eq.s32.totalorder %s18, 1
      %p99 = scmp.ne.s32.totalorder %s94, %s96
      %p100 = scmp.eq.s32.totalorder %s18, 0
      %p101 = por %p99, %p100
      %p102 = scmp.ne.s32.totalorder %s94, %s96
      %p103 = scmp.eq.s32.totalorder %s23, 1
      %p104 = por %p102, %p103
      %p105 = scmp.ne.s32.totalorder %s96, %s97
      %p106 = scmp.eq.s32.totalorder %s23, 0
      %p107 = por %p105, %p106
      %p108 = scmp.ne.s32.totalorder %s96, %s97
      %p109 = scmp.eq.s32.totalorder %s24, 1
      %p110 = por %p108, %p109
      %p112 = scmp.ne.s32.totalorder %s97, %s111
      %p113 = scmp.eq.s32.totalorder %s24, 0
      %p114 = por %p112, %p113
      %s116 = sadd.s32 %s115, 1
      %p119 = scmp.eq.s32.totalorder %s18, 1
      %p120 = scmp.ne.s32.totalorder %s115, %s117
      %p121 = scmp.eq.s32.totalorder %s18, 0
      %p122 = por %p120, %p121
      %p123 = scmp.ne.s32.totalorder %s115, %s117
      %p124 = scmp.eq.s32.totalorder %s23, 1
      %p125 = por %p123, %p124
      %p126 = scmp.ne.s32.totalorder %s117, %s118
      %p127 = scmp.eq.s32.totalorder %s23, 0
      %p128 = por %p126, %p127
      %p129 = scmp.ne.s32.totalorder %s117, %s118
      %p130 = scmp.eq.s32.totalorder %s24, 1
      %p131 = por %p129, %p130
      %p133 = scmp.ne.s32.totalorder %s118, %s132
      %p134 = scmp.eq.s32.totalorder %s24, 0
      %p135 = por %p133, %p134
      %s137 = sadd.s32 %s136, 1
      %p140 = scmp.eq.s32.totalorder %s18, 1
      %p141 = scmp.ne.s32.totalorder %s136, %s138
      %p142 = scmp.eq.s32.totalorder %s18, 0
      %p143 = por %p141, %p142
      %p144 = scmp.ne.s32.totalorder %s136, %s138
      %p145 = scmp.eq.s32.totalorder %s23, 1
      %p146 = por %p144, %p145
      %p147 = scmp.ne.s32.totalorder %s138, %s139
      %p148 = scmp.eq.s32.totalorder %s23, 0
      %p149 = por %p147, %p148
      %p150 = scmp.ne.s32.totalorder %s138, %s139
      %p151 = scmp.eq.s32.totalorder %s24, 1
      %p152 = por %p150, %p151
      %p154 = scmp.ne.s32.totalorder %s139, %s153
      %p155 = scmp.eq.s32.totalorder %s24, 0
      %p156 = por %p154, %p155
      %s158 = sadd.s32 %s157, 1
      %p161 = scmp.eq.s32.totalorder %s18, 1
      %p162 = scmp.ne.s32.totalorder %s157, %s159
      %p163 = scmp.eq.s32.totalorder %s18, 0
      %p164 = por %p162, %p163
      %p165 = scmp.ne.s32.totalorder %s157, %s159
      %p166 = scmp.eq.s32.totalorder %s23, 1
      %p167 = por %p165, %p166
      %p168 = scmp.ne.s32.totalorder %s159, %s160
      %p169 = scmp.eq.s32.totalorder %s23, 0
      %p170 = por %p168, %p169
      %p171 = scmp.ne.s32.totalorder %s159, %s160
      %p172 = scmp.eq.s32.totalorder %s24, 1
      %p173 = por %p171, %p172
      %p175 = scmp.ne.s32.totalorder %s160, %s174
      %p176 = scmp.eq.s32.totalorder %s24, 0
      %p177 = por %p175, %p176
      %s178 = ssub.s32 %s18, %s25
      %p179 = scmp.eq.s32.totalorder %s178, 0
      %s181 = sadd.s32 %s180, 1
      %s182 = scalar_select %p179, %s180, %s181
      %p185 = pneg %p179
      %p186 = scmp.eq.s32.totalorder %s18, 1
      %p187 = por %p185, %p186
      %p188 = scmp.ne.s32.totalorder %s180, %s183
      %p189 = scmp.eq.s32.totalorder %s18, 0
      %p190 = por %p188, %p189
      %p191 = scmp.ne.s32.totalorder %s180, %s183
      %p192 = scmp.eq.s32.totalorder %s23, 1
      %p193 = por %p191, %p192
      %p194 = scmp.ne.s32.totalorder %s183, %s184
      %p195 = scmp.eq.s32.totalorder %s23, 0
      %p196 = por %p194, %p195
      %p197 = scmp.ne.s32.totalorder %s183, %s184
      %p198 = scmp.eq.s32.totalorder %s24, 1
      %p199 = por %p197, %p198
      %p201 = scmp.ne.s32.totalorder %s184, %s200
      %p202 = scmp.eq.s32.totalorder %s24, 0
      %p203 = por %p201, %p202
      %p204 = scmp.le.s32.totalorder 1, %s18
      %p205 = scmp.lt.s32.totalorder %s18, 3
      %p206 = pnand %p204, %p205
      %p207 = pneg %p206
      // Predicated region
      $region9: #{encoder_forward.2} parent=5 // pred_check
        _
      $region10: #{encoder_forward.2} parent=5 // pred_check_branch
        %209 = sbr.rel (%p206) target = $region12
      $region11: #{encoder_forward.2} parent=5 // pred_region
        %s210 = ssub.s32 %s18, 1
        // Predicated region
        $region13: #{encoder_forward.2} parent=11 // pred_check
          %p211 = pneg %p65
        $region14: #{encoder_forward.2} parent=11 // pred_check_branch
          %213 = sbr.rel (%p211) target = $region16
        $region15: #{encoder_forward.2} parent=11 // pred_region
          %215 = vsyncadd [#allocation5], 0
          %s216 = sshll.u32 %s1, 4
          %s217 = int_to_ptr.hbm [resolvable:$true] %s216
          %s218 = sshll.u32 [#allocation4], 4
          %s219 = int_to_ptr.vmem [resolvable:$true] %s218
          %224 = dma.hbm_to_vmem [thread:$0]  %s217, 256, %s219, [#allocation5], 128, 128, 8
        $region16: #{encoder_forward.2} parent=11 // pred_fallthru
          _
        // Predicated region
        $region17: #{encoder_forward.2} parent=11 // pred_check
          %p225 = pneg %p86
        $region18: #{encoder_forward.2} parent=11 // pred_check_branch
          %227 = sbr.rel (%p225) target = $region20
        $region19: #{encoder_forward.2} parent=11 // pred_region
          %229 = vsyncadd [#allocation5], 0
          %s231 = sshll.u32 %s2, 4
          %s232 = int_to_ptr.hbm [resolvable:$true] %s231
          %s233 = sshll.u32 [#allocation6], 4
          %s234 = int_to_ptr.vmem [resolvable:$true] %s233
          %236 = dma.hbm_to_vmem [thread:$0]  %s232, 16, %s234, [#allocation5]
        $region20: #{encoder_forward.2} parent=11 // pred_fallthru
          _
        // Predicated region
        $region21: #{encoder_forward.2} parent=11 // pred_check
          %p237 = pneg %p107
        $region22: #{encoder_forward.2} parent=11 // pred_check_branch
          %239 = sbr.rel (%p237) target = $region24
        $region23: #{encoder_forward.2} parent=11 // pred_region
          _
        $region24: #{encoder_forward.2} parent=11 // pred_fallthru
          _
        // Predicated region
        $region25: #{encoder_forward.2} parent=11 // pred_check
          %p240 = pneg %p128
        $region26: #{encoder_forward.2} parent=11 // pred_check_branch
          %242 = sbr.rel (%p240) target = $region28
        $region27: #{encoder_forward.2} parent=11 // pred_region
          %244 = vsyncadd [#allocation8], 0
          %s246 = sshll.u32 %s4, 4
          %s247 = int_to_ptr.hbm [resolvable:$true] %s246
          %s248 = sshll.u32 [#allocation7], 4
          %s249 = int_to_ptr.vmem [resolvable:$true] %s248
          %251 = dma.hbm_to_vmem [thread:$0]  %s247, 16, %s249, [#allocation8]
        $region28: #{encoder_forward.2} parent=11 // pred_fallthru
          _
        // Predicated region
        $region29: #{encoder_forward.2} parent=11 // pred_check
          %p252 = pneg %p149
        $region30: #{encoder_forward.2} parent=11 // pred_check_branch
          %254 = sbr.rel (%p252) target = $region32
        $region31: #{encoder_forward.2} parent=11 // pred_region
          %256 = vsyncadd [#allocation8], 0
          %s257 = sshll.u32 %s5, 4
          %s258 = int_to_ptr.hbm [resolvable:$true] %s257
          %s259 = sshll.u32 [#allocation9], 4
          %s260 = int_to_ptr.vmem [resolvable:$true] %s259
          %265 = dma.hbm_to_vmem [thread:$0]  %s258, 256, %s260, [#allocation8], 128, 128, 8
        $region32: #{encoder_forward.2} parent=11 // pred_fallthru
          _
        // Predicated region
        $region33: #{encoder_forward.2} parent=11 // pred_check
          %p266 = pneg %p170
        $region34: #{encoder_forward.2} parent=11 // pred_check_branch
          %268 = sbr.rel (%p266) target = $region36
        $region35: #{encoder_forward.2} parent=11 // pred_region
          _
        $region36: #{encoder_forward.2} parent=11 // pred_fallthru
          _
      $region12: #{encoder_forward.2} parent=5 // pred_fallthru
        _
      %p269 = scmp.lt.s32.totalorder %s18, 2
      // Predicated region
      $region37: #{encoder_forward.2} parent=5 // pred_check
        %p270 = pneg %p269
      $region38: #{encoder_forward.2} parent=5 // pred_check_branch
        %272 = sbr.rel (%p270) target = $region40
      $region39: #{encoder_forward.2} parent=5 // pred_region
        // Predicated region
        $region41: #{encoder_forward.2} parent=39 // pred_check
          %p273 = pneg %p38
        $region42: #{encoder_forward.2} parent=39 // pred_check_branch
          %275 = sbr.rel (%p273) target = $region44
        $region43: #{encoder_forward.2} parent=39 // pred_region
          %s276 = sand.u32 %s28, 1
          %s277 = scalar_lea.sflag [#allocation3], %s276
          %s278 = sand.u32 %s28, 1
          %s279 = smul.addr %s278, 8
          %s280 = scalar_lea.vmem [#allocation2], %s279
          %282 = vsyncadd %s277, 0
          %s283 = smul.addr %s18, 8
          %s284 = scalar_lea.hbm %s0, %s283
          %s286 = sshll.u32 %s284, 4
          %s287 = int_to_ptr.hbm [resolvable:$true] %s286
          %s288 = sshll.u32 %s280, 4
          %s289 = int_to_ptr.vmem [resolvable:$true] %s288
          %291 = dma.hbm_to_vmem [thread:$0]  %s287, 128, %s289, %s277
        $region44: #{encoder_forward.2} parent=39 // pred_fallthru
          _
      $region40: #{encoder_forward.2} parent=5 // pred_fallthru
        _
      %p292 = scmp.le.s32.totalorder 1, %s18
      %p293 = scmp.lt.s32.totalorder %s18, 3
      %p294 = pnand %p292, %p293
      %p295 = pneg %p294
      // Predicated region
      $region45: #{encoder_forward.2} parent=5 // pred_check
        _
      $region46: #{encoder_forward.2} parent=5 // pred_check_branch
        %297 = sbr.rel (%p294) target = $region48
      $region47: #{encoder_forward.2} parent=5 // pred_region
        %s298 = ssub.s32 %s18, 1
        %s299 = sand.u32 %s31, 1
        %s300 = scalar_lea.sflag [#allocation3], %s299
        %s301 = sand.u32 %s31, 1
        %s302 = smul.addr %s301, 8
        %s303 = scalar_lea.vmem [#allocation2], %s302
        // Predicated region
        $region49: #{encoder_forward.2} parent=47 // pred_check
          %p304 = pneg %p44
        $region50: #{encoder_forward.2} parent=47 // pred_check_branch
          %306 = sbr.rel (%p304) target = $region52
        $region51: #{encoder_forward.2} parent=47 // pred_region
          %308 = dma.done %s300, 128
        $region52: #{encoder_forward.2} parent=47 // pred_fallthru
          _
        // Predicated region
        $region53: #{encoder_forward.2} parent=47 // pred_check
          %p309 = pneg %p65
        $region54: #{encoder_forward.2} parent=47 // pred_check_branch
          %311 = sbr.rel (%p309) target = $region56
        $region55: #{encoder_forward.2} parent=47 // pred_region
          %313 = dma.done [#allocation5], 256
        $region56: #{encoder_forward.2} parent=47 // pred_fallthru
          _
        // Predicated region
        $region57: #{encoder_forward.2} parent=47 // pred_check
          %p314 = pneg %p86
        $region58: #{encoder_forward.2} parent=47 // pred_check_branch
          %316 = sbr.rel (%p314) target = $region60
        $region59: #{encoder_forward.2} parent=47 // pred_region
          %318 = dma.done [#allocation5], 16
        $region60: #{encoder_forward.2} parent=47 // pred_fallthru
          _
        // Predicated region
        $region61: #{encoder_forward.2} parent=47 // pred_check
          %p319 = pneg %p128
        $region62: #{encoder_forward.2} parent=47 // pred_check_branch
          %321 = sbr.rel (%p319) target = $region64
        $region63: #{encoder_forward.2} parent=47 // pred_region
          %323 = dma.done [#allocation8], 16
        $region64: #{encoder_forward.2} parent=47 // pred_fallthru
          _
        // Predicated region
        $region65: #{encoder_forward.2} parent=47 // pred_check
          %p324 = pneg %p149
        $region66: #{encoder_forward.2} parent=47 // pred_check_branch
          %326 = sbr.rel (%p324) target = $region68
        $region67: #{encoder_forward.2} parent=47 // pred_region
          %328 = dma.done [#allocation8], 256
        $region68: #{encoder_forward.2} parent=47 // pred_fallthru
          _
        %s329 = sand.u32 %s31, 1
        %s330 = scalar_lea.sflag [#allocation3], %s329
        %s331 = sand.u32 %s31, 1
        %s332 = smul.addr %s331, 8
        %s333 = scalar_lea.vmem [#allocation2], %s332
        %p334 = pneg %p44
        %p335 = pneg %p41
        %p336 = pneg %p65
        %p337 = pneg %p62
        %p338 = pneg %p86
        %p339 = pneg %p83
        %p340 = pneg %p107
        %p341 = pneg %p104
        %p342 = pneg %p128
        %p343 = pneg %p125
        %p344 = pneg %p149
        %p345 = pneg %p146
        %p346 = pneg %p170
        %p347 = pneg %p167
        %p348 = pneg %p196
        %p349 = pneg %p193
        %p350 = scmp.lt.s32.totalorder %s23, 1
        %s351 = scalar_select %p350, %s23, 1
        %s352 = smul.addr %s351, 8
        %s353 = scalar_lea.vmem %s7, %s352
        %p354 = scmp.lt.s32.totalorder %s23, 1
        %s355 = scalar_select %p354, %s23, 1
        %s356 = smul.addr %s355, 8
        %s357 = scalar_lea.vmem %s7, %s356
        %v358 = vld [vmem:[%s303] sm:$0xff]
        %v359 = vld [vmem:[#allocation4] sm:$0xff]
        %v360 = vld [vmem:[#allocation4 + $0x8] sm:$0xff]
        %v361 = vld [vmem:[#allocation6] sm:$0x1]
        %v363 = vperm.slane %v361, 0
        %vm365 = vcmask 130048
        %v367 = vsel %vm365, %v358, 0
        %369 = vmatpush.msra.mxu0 0.0
        %370 = vmatpush.msra.mxu0 0.0
        %371 = vmatpush.msra.mxu0 0.0
        %372 = vmatpush.msra.mxu0 0.0
        %373 = vmatpush.msra.mxu0 0.0
        %374 = vmatpush.msra.mxu0 0.0
        %375 = vmatpush.msra.mxu0 0.0
        %376 = vmatpush.msra.mxu0 0.0
        %377 = vmatpush.msra.mxu0 0.0
        %378 = vmatpush.msra.mxu0 0.0
        %379 = vmatpush.msra.mxu0 0.0
        %380 = vmatpush.msra.mxu0 0.0
        %381 = vmatpush.msra.mxu0 0.0
        %382 = vmatpush.msra.mxu0 0.0
        %383 = vmatpush.msra.mxu0 %v360
        %384 = vmatpush.msra.mxu0 %v359
        %385 = vmatmul.f32.gmra.mxu0 %v367
        %v386 = vpop.f32.mrf.mxu0
        %v387 = vadd.f32 %v363, %v386
        %388 = vdwg.mxu0
        %v389 = vmax.f32 %v387, 0.0
        %v390 = vld [vmem:[%s3] sm:$0xff]
        %v391 = vld [vmem:[%s3 + $0x8] sm:$0xff]
        %v392 = vld [vmem:[%s3 + $0x10] sm:$0xff]
        %v393 = vld [vmem:[%s3 + $0x18] sm:$0xff]
        %v394 = vld [vmem:[#allocation7] sm:$0x1]
        %v396 = vperm.slane %v394, 0
        %vm398 = vcmask 261120
        %v400 = vsel %vm398, %v389, 0
        %402 = vmatpush.msra.mxu0 0.0
        %403 = vmatpush.msra.mxu0 0.0
        %404 = vmatpush.msra.mxu0 0.0
        %405 = vmatpush.msra.mxu0 0.0
        %406 = vmatpush.msra.mxu0 0.0
        %407 = vmatpush.msra.mxu0 0.0
        %408 = vmatpush.msra.mxu0 0.0
        %409 = vmatpush.msra.mxu0 0.0
        %410 = vmatpush.msra.mxu0 0.0
        %411 = vmatpush.msra.mxu0 0.0
        %412 = vmatpush.msra.mxu0 0.0
        %413 = vmatpush.msra.mxu0 0.0
        %414 = vmatpush.msra.mxu0 %v393
        %415 = vmatpush.msra.mxu0 %v392
        %416 = vmatpush.msra.mxu0 %v391
        %417 = vmatpush.msra.mxu0 %v390
        %418 = vmatmul.f32.gmra.mxu0 %v400
        %v419 = vpop.f32.mrf.mxu0
        %v420 = vadd.f32 %v396, %v419
        %421 = vdwg.mxu0
        %v422 = vmax.f32 %v420, 0.0
        %v423 = vld [vmem:[#allocation9] sm:$0xff]
        %v424 = vld [vmem:[#allocation9 + $0x8] sm:$0xff]
        %v425 = vld [vmem:[%s6] sm:$0x1]
        %v427 = vperm.slane %v425, 0
        %v430 = vsel %vm365, %v422, 0
        %432 = vmatpush.msra.mxu0 0.0
        %433 = vmatpush.msra.mxu0 0.0
        %434 = vmatpush.msra.mxu0 0.0
        %435 = vmatpush.msra.mxu0 0.0
        %436 = vmatpush.msra.mxu0 0.0
        %437 = vmatpush.msra.mxu0 0.0
        %438 = vmatpush.msra.mxu0 0.0
        %439 = vmatpush.msra.mxu0 0.0
        %440 = vmatpush.msra.mxu0 0.0
        %441 = vmatpush.msra.mxu0 0.0
        %442 = vmatpush.msra.mxu0 0.0
        %443 = vmatpush.msra.mxu0 0.0
        %444 = vmatpush.msra.mxu0 0.0
        %445 = vmatpush.msra.mxu0 0.0
        %446 = vmatpush.msra.mxu0 %v424
        %447 = vmatpush.msra.mxu0 %v423
        %448 = vmatmul.f32.gmra.mxu0 %v430
        %v449 = vpop.f32.mrf.mxu0
        %v450 = vadd.f32 %v427, %v449
        %451 = vdwg.mxu0
        %452 = vst [vmem:[%s357] sm:$0xff] %v450
        %p453 = scmp.lt.s32.totalorder %s23, 1
        %s454 = scalar_select %p453, %s23, 1
        %s455 = smul.addr %s454, 8
        %s456 = scalar_lea.vmem %s7, %s455
        // Predicated region
        $region69: #{encoder_forward.2} parent=47 // pred_check
          %p457 = pneg %p193
        $region70: #{encoder_forward.2} parent=47 // pred_check_branch
          %459 = sbr.rel (%p457) target = $region72
        $region71: #{encoder_forward.2} parent=47 // pred_region
          _
        $region72: #{encoder_forward.2} parent=47 // pred_fallthru
          _
      $region48: #{encoder_forward.2} parent=5 // pred_fallthru
        _
      %p460 = scmp.le.s32.totalorder 2, %s18
      // Predicated region
      $region73: #{encoder_forward.2} parent=5 // pred_check
        %p461 = pneg %p460
      $region74: #{encoder_forward.2} parent=5 // pred_check_branch
        %463 = sbr.rel (%p461) target = $region76
      $region75: #{encoder_forward.2} parent=5 // pred_region
        %s464 = ssub.s32 %s18, 2
        // Predicated region
        $region77: #{encoder_forward.2} parent=75 // pred_check
          %p465 = pneg %p199
        $region78: #{encoder_forward.2} parent=75 // pred_check_branch
          %467 = sbr.rel (%p465) target = $region80
        $region79: #{encoder_forward.2} parent=75 // pred_region
          %p468 = scmp.lt.s32.totalorder %s24, 1
          %s469 = scalar_select %p468, %s24, 1
          %s470 = smul.addr %s469, 8
          %s471 = scalar_lea.vmem %s7, %s470
        $region80: #{encoder_forward.2} parent=75 // pred_fallthru
          _
      $region76: #{encoder_forward.2} parent=5 // pred_fallthru
        _
    $region6: #{encoder_forward.2} parent=1 // loop_footer
      %s22 = sadd.s32 1, %s18
    $region7: #{encoder_forward.2} parent=1 // loop_footer_branch
      %17 = sbr.rel target = $region3
    $region8: #{encoder_forward.2} parent=1 // loop_exit
      _
    %472 = vsyncpa [#allocation3], 1
    %s473 = scalar_lea.sflag [#allocation3], 1
    %474 = vsyncpa %s473, 1
    %475 = vsyncpa [#allocation5], 1
    %476 = vsyncpa [#allocation8], 1

// kernel: encoder_forward.3
$region0: #{encoder_forward.3}
  #allocation0 [shape = 'u32[]', space=smem, size = 0x4, offset = 0x4, fixed_abs, tag = 'smem constant byte address 0x4 - core index']
  #allocation1 [shape = 'u32[72,128]{1,0:T(1,128)}', space=vmem, size = 0x9000, scoped, tag = 'internal scratch']
  #allocation2 [shape = 'f32[2,2,32]{2,1,0:T(2,128)}', space=vmem, size = 0x800, scoped, tag = 'scratch operand']
  #allocation3 [shape = 'f32[2,2,32]{2,1,0:T(2,128)}', space=vmem, size = 0x800, scoped, tag = 'scratch operand']
  %s0 = inlined_call_operand.vmem [shape: f32[8,2,128], index: 0, kind: input, shape index: {}]
  %s1 = inlined_call_operand.vmem [shape: f32[2,32,128], index: 1, kind: input, shape index: {}]
  %s2 = inlined_call_operand.vmem [shape: f32[1,32,128], index: 2, kind: input, shape index: {}]
  %s3 = inlined_call_operand.vmem [shape: f32[1,1,128], index: 3, kind: input, shape index: {}]
  %s4 = inlined_call_operand.vmem [shape: f32[2,2,32], index: 4, kind: input, shape index: {}]
  %s5 = inlined_call_operand.vmem [shape: f32[2,2,32], index: 5, kind: input, shape index: {}]
  %s6 = inlined_call_operand.hbm [shape: f32[8,2,32], index: 6, kind: output, shape index: {0}]
  %s7 = inlined_call_operand.hbm [shape: f32[2,2,32], index: 7, kind: output, shape index: {1}]
  %s8 = inlined_call_operand.hbm [shape: f32[2,2,32], index: 8, kind: output, shape index: {2}]
  %9 = xla_tuple %s6, %s7, %s8
  %s10 = sld [smem:[#allocation0]]
  $region81: #{encoder_forward.3} parent=0
    _
  %s12 = ssub.s32 1, %s10
  %s13 = scalar_select 0, %s12, %s10
  $region1: #{encoder_forward.3} parent=0
    #allocation4 [shape = 'u8[8192]{0}', space=vmem, size = 0x2000, scoped, tag = 'output window, operand 0, single buffered']
    #allocation5 [shape = 's32[2]{0}', space=sflag, size = 0x8, scoped, tag = 'scoped memory for encoder_forward.3']
    #allocation6 [shape = 'u8[2048]{0}', space=vmem, size = 0x800, scoped, tag = 'output window, operand 1, single buffered']
    #allocation7 [shape = 's32[1]{0}', space=sflag, size = 0x4, scoped, tag = 'scoped memory for encoder_forward.3']
    #allocation8 [shape = 'u8[2048]{0}', space=vmem, size = 0x800, scoped, tag = 'output window, operand 2, single buffered']
    %14 = vsyncpa [#allocation5], 0
    %15 = vsyncpa [#allocation7], 0
    loop: start=0, step=1, limit=10
    $region2: #{encoder_forward.3} parent=1 // loop_pre_header
      _
    $region3: #{encoder_forward.3} parent=1 // loop_header
      %s17 = sphi 0, %s21
      %p18 = scmp.ge.s32.totalorder %s17, 10
      %s25 = sphi 0, %s25
      %s27 = sphi 0, %s25
      %s28 = sphi 0, %s27
      %s42 = sphi 0, %s28
      %s46 = sphi 0, %s46
      %s48 = sphi 0, %s46
      %s49 = sphi 0, %s48
      %s63 = sphi 0, %s49
      %s67 = sphi 0, %s67
      %s69 = sphi 0, %s67
      %s70 = sphi 0, %s69
      %s84 = sphi 0, %s70
      %s88 = sphi 0, %s88
      %s90 = sphi 0, %s88
      %s91 = sphi 0, %s90
      %s105 = sphi 0, %s91
      %s109 = sphi 0, %s109
      %s111 = sphi 0, %s109
      %s112 = sphi 0, %s111
      %s126 = sphi 0, %s112
      %s130 = sphi 0, %s130
      %s132 = sphi 0, %s130
      %s133 = sphi 0, %s132
      %s147 = sphi 0, %s133
      %s151 = sphi 0, %s151
      %s153 = sphi 0, %s151
      %s154 = sphi 0, %s153
      %s168 = sphi 0, %s154
      %s172 = sphi 0, %s172
      %s174 = sphi 0, %s172
      %s175 = sphi 0, %s174
      %s189 = sphi 0, %s175
      %s193 = sphi 0, %s193
      %s195 = sphi 0, %s193
      %s196 = sphi 0, %s195
      %s210 = sphi 0, %s196
    $region4: #{encoder_forward.3} parent=1 // loop_header_branch
      %20 = sbr.rel (%p18) target = $region8
    $region5: #{encoder_forward.3} parent=1 // loop_body
      %s22 = ssub.s32 %s17, 1
      %s23 = ssub.s32 %s17, 2
      %s24 = sadd.s32 %s17, 1
      %s26 = sadd.s32 %s25, 1
      %p29 = scmp.eq.s32.totalorder %s17, 7
      %p30 = scmp.ne.s32.totalorder %s25, %s27
      %p31 = scmp.eq.s32.totalorder %s17, 0
      %p32 = por %p30, %p31
      %p33 = scmp.ne.s32.totalorder %s25, %s27
      %p34 = scmp.eq.s32.totalorder %s22, 7
      %p35 = por %p33, %p34
      %p36 = scmp.ne.s32.totalorder %s27, %s28
      %p37 = scmp.eq.s32.totalorder %s22, 0
      %p38 = por %p36, %p37
      %p39 = scmp.ne.s32.totalorder %s27, %s28
      %p40 = scmp.eq.s32.totalorder %s23, 7
      %p41 = por %p39, %p40
      %p43 = scmp.ne.s32.totalorder %s28, %s42
      %p44 = scmp.eq.s32.totalorder %s23, 0
      %p45 = por %p43, %p44
      %s47 = sadd.s32 %s46, 1
      %p50 = scmp.eq.s32.totalorder %s17, 7
      %p51 = scmp.ne.s32.totalorder %s46, %s48
      %p52 = scmp.eq.s32.totalorder %s17, 0
      %p53 = por %p51, %p52
      %p54 = scmp.ne.s32.totalorder %s46, %s48
      %p55 = scmp.eq.s32.totalorder %s22, 7
      %p56 = por %p54, %p55
      %p57 = scmp.ne.s32.totalorder %s48, %s49
      %p58 = scmp.eq.s32.totalorder %s22, 0
      %p59 = por %p57, %p58
      %p60 = scmp.ne.s32.totalorder %s48, %s49
      %p61 = scmp.eq.s32.totalorder %s23, 7
      %p62 = por %p60, %p61
      %p64 = scmp.ne.s32.totalorder %s49, %s63
      %p65 = scmp.eq.s32.totalorder %s23, 0
      %p66 = por %p64, %p65
      %s68 = sadd.s32 %s67, 1
      %p71 = scmp.eq.s32.totalorder %s17, 7
      %p72 = scmp.ne.s32.totalorder %s67, %s69
      %p73 = scmp.eq.s32.totalorder %s17, 0
      %p74 = por %p72, %p73
      %p75 = scmp.ne.s32.totalorder %s67, %s69
      %p76 = scmp.eq.s32.totalorder %s22, 7
      %p77 = por %p75, %p76
      %p78 = scmp.ne.s32.totalorder %s69, %s70
      %p79 = scmp.eq.s32.totalorder %s22, 0
      %p80 = por %p78, %p79
      %p81 = scmp.ne.s32.totalorder %s69, %s70
      %p82 = scmp.eq.s32.totalorder %s23, 7
      %p83 = por %p81, %p82
      %p85 = scmp.ne.s32.totalorder %s70, %s84
      %p86 = scmp.eq.s32.totalorder %s23, 0
      %p87 = por %p85, %p86
      %s89 = sadd.s32 %s88, 1
      %p92 = scmp.eq.s32.totalorder %s17, 7
      %p93 = scmp.ne.s32.totalorder %s88, %s90
      %p94 = scmp.eq.s32.totalorder %s17, 0
      %p95 = por %p93, %p94
      %p96 = scmp.ne.s32.totalorder %s88, %s90
      %p97 = scmp.eq.s32.totalorder %s22, 7
      %p98 = por %p96, %p97
      %p99 = scmp.ne.s32.totalorder %s90, %s91
      %p100 = scmp.eq.s32.totalorder %s22, 0
      %p101 = por %p99, %p100
      %p102 = scmp.ne.s32.totalorder %s90, %s91
      %p103 = scmp.eq.s32.totalorder %s23, 7
      %p104 = por %p102, %p103
      %p106 = scmp.ne.s32.totalorder %s91, %s105
      %p107 = scmp.eq.s32.totalorder %s23, 0
      %p108 = por %p106, %p107
      %s110 = sadd.s32 %s109, 1
      %p113 = scmp.eq.s32.totalorder %s17, 7
      %p114 = scmp.ne.s32.totalorder %s109, %s111
      %p115 = scmp.eq.s32.totalorder %s17, 0
      %p116 = por %p114, %p115
      %p117 = scmp.ne.s32.totalorder %s109, %s111
      %p118 = scmp.eq.s32.totalorder %s22, 7
      %p119 = por %p117, %p118
      %p120 = scmp.ne.s32.totalorder %s111, %s112
      %p121 = scmp.eq.s32.totalorder %s22, 0
      %p122 = por %p120, %p121
      %p123 = scmp.ne.s32.totalorder %s111, %s112
      %p124 = scmp.eq.s32.totalorder %s23, 7
      %p125 = por %p123, %p124
      %p127 = scmp.ne.s32.totalorder %s112, %s126
      %p128 = scmp.eq.s32.totalorder %s23, 0
      %p129 = por %p127, %p128
      %s131 = sadd.s32 %s130, 1
      %p134 = scmp.eq.s32.totalorder %s17, 7
      %p135 = scmp.ne.s32.totalorder %s130, %s132
      %p136 = scmp.eq.s32.totalorder %s17, 0
      %p137 = por %p135, %p136
      %p138 = scmp.ne.s32.totalorder %s130, %s132
      %p139 = scmp.eq.s32.totalorder %s22, 7
      %p140 = por %p138, %p139
      %p141 = scmp.ne.s32.totalorder %s132, %s133
      %p142 = scmp.eq.s32.totalorder %s22, 0
      %p143 = por %p141, %p142
      %p144 = scmp.ne.s32.totalorder %s132, %s133
      %p145 = scmp.eq.s32.totalorder %s23, 7
      %p146 = por %p144, %p145
      %p148 = scmp.ne.s32.totalorder %s133, %s147
      %p149 = scmp.eq.s32.totalorder %s23, 0
      %p150 = por %p148, %p149
      %s152 = sadd.s32 %s151, 1
      %p155 = scmp.eq.s32.totalorder %s17, 7
      %p156 = scmp.ne.s32.totalorder %s151, %s153
      %p157 = scmp.eq.s32.totalorder %s17, 0
      %p158 = por %p156, %p157
      %p159 = scmp.ne.s32.totalorder %s151, %s153
      %p160 = scmp.eq.s32.totalorder %s22, 7
      %p161 = por %p159, %p160
      %p162 = scmp.ne.s32.totalorder %s153, %s154
      %p163 = scmp.eq.s32.totalorder %s22, 0
      %p164 = por %p162, %p163
      %p165 = scmp.ne.s32.totalorder %s153, %s154
      %p166 = scmp.eq.s32.totalorder %s23, 7
      %p167 = por %p165, %p166
      %p169 = scmp.ne.s32.totalorder %s154, %s168
      %p170 = scmp.eq.s32.totalorder %s23, 0
      %p171 = por %p169, %p170
      %s173 = sadd.s32 %s172, 1
      %p176 = scmp.eq.s32.totalorder %s17, 7
      %p177 = scmp.ne.s32.totalorder %s172, %s174
      %p178 = scmp.eq.s32.totalorder %s17, 0
      %p179 = por %p177, %p178
      %p180 = scmp.ne.s32.totalorder %s172, %s174
      %p181 = scmp.eq.s32.totalorder %s22, 7
      %p182 = por %p180, %p181
      %p183 = scmp.ne.s32.totalorder %s174, %s175
      %p184 = scmp.eq.s32.totalorder %s22, 0
      %p185 = por %p183, %p184
      %p186 = scmp.ne.s32.totalorder %s174, %s175
      %p187 = scmp.eq.s32.totalorder %s23, 7
      %p188 = por %p186, %p187
      %p190 = scmp.ne.s32.totalorder %s175, %s189
      %p191 = scmp.eq.s32.totalorder %s23, 0
      %p192 = por %p190, %p191
      %s194 = sadd.s32 %s193, 1
      %p197 = scmp.eq.s32.totalorder %s17, 7
      %p198 = scmp.ne.s32.totalorder %s193, %s195
      %p199 = scmp.eq.s32.totalorder %s17, 0
      %p200 = por %p198, %p199
      %p201 = scmp.ne.s32.totalorder %s193, %s195
      %p202 = scmp.eq.s32.totalorder %s22, 7
      %p203 = por %p201, %p202
      %p204 = scmp.ne.s32.totalorder %s195, %s196
      %p205 = scmp.eq.s32.totalorder %s22, 0
      %p206 = por %p204, %p205
      %p207 = scmp.ne.s32.totalorder %s195, %s196
      %p208 = scmp.eq.s32.totalorder %s23, 7
      %p209 = por %p207, %p208
      %p211 = scmp.ne.s32.totalorder %s196, %s210
      %p212 = scmp.eq.s32.totalorder %s23, 0
      %p213 = por %p211, %p212
      %p214 = scmp.le.s32.totalorder 1, %s17
      %p215 = scmp.lt.s32.totalorder %s17, 9
      %p216 = pnand %p214, %p215
      %p217 = pneg %p216
      // Predicated region
      $region9: #{encoder_forward.3} parent=5 // pred_check
        _
      $region10: #{encoder_forward.3} parent=5 // pred_check_branch
        %219 = sbr.rel (%p216) target = $region12
      $region11: #{encoder_forward.3} parent=5 // pred_region
        %s220 = ssub.s32 %s17, 1
        // Predicated region
        $region13: #{encoder_forward.3} parent=11 // pred_check
          %p221 = pneg %p38
        $region14: #{encoder_forward.3} parent=11 // pred_check_branch
          %223 = sbr.rel (%p221) target = $region16
        $region15: #{encoder_forward.3} parent=11 // pred_region
          _
        $region16: #{encoder_forward.3} parent=11 // pred_fallthru
          _
        // Predicated region
        $region17: #{encoder_forward.3} parent=11 // pred_check
          %p224 = pneg %p59
        $region18: #{encoder_forward.3} parent=11 // pred_check_branch
          %226 = sbr.rel (%p224) target = $region20
        $region19: #{encoder_forward.3} parent=11 // pred_region
          _
        $region20: #{encoder_forward.3} parent=11 // pred_fallthru
          _
        // Predicated region
        $region21: #{encoder_forward.3} parent=11 // pred_check
          %p227 = pneg %p80
        $region22: #{encoder_forward.3} parent=11 // pred_check_branch
          %229 = sbr.rel (%p227) target = $region24
        $region23: #{encoder_forward.3} parent=11 // pred_region
          _
        $region24: #{encoder_forward.3} parent=11 // pred_fallthru
          _
        // Predicated region
        $region25: #{encoder_forward.3} parent=11 // pred_check
          %p230 = pneg %p101
        $region26: #{encoder_forward.3} parent=11 // pred_check_branch
          %232 = sbr.rel (%p230) target = $region28
        $region27: #{encoder_forward.3} parent=11 // pred_region
          _
        $region28: #{encoder_forward.3} parent=11 // pred_fallthru
          _
        // Predicated region
        $region29: #{encoder_forward.3} parent=11 // pred_check
          %p233 = pneg %p122
        $region30: #{encoder_forward.3} parent=11 // pred_check_branch
          %235 = sbr.rel (%p233) target = $region32
        $region31: #{encoder_forward.3} parent=11 // pred_region
          _
        $region32: #{encoder_forward.3} parent=11 // pred_fallthru
          _
        // Predicated region
        $region33: #{encoder_forward.3} parent=11 // pred_check
          %p236 = pneg %p143
        $region34: #{encoder_forward.3} parent=11 // pred_check_branch
          %238 = sbr.rel (%p236) target = $region36
        $region35: #{encoder_forward.3} parent=11 // pred_region
          _
        $region36: #{encoder_forward.3} parent=11 // pred_fallthru
          _
      $region12: #{encoder_forward.3} parent=5 // pred_fallthru
        _
      %p239 = scmp.lt.s32.totalorder %s17, 8
      // Predicated region
      $region37: #{encoder_forward.3} parent=5 // pred_check
        %p240 = pneg %p239
      $region38: #{encoder_forward.3} parent=5 // pred_check_branch
        %242 = sbr.rel (%p240) target = $region40
      $region39: #{encoder_forward.3} parent=5 // pred_region
        _
      $region40: #{encoder_forward.3} parent=5 // pred_fallthru
        _
      %p243 = scmp.le.s32.totalorder 1, %s17
      %p244 = scmp.lt.s32.totalorder %s17, 9
      %p245 = pnand %p243, %p244
      %p246 = pneg %p245
      // Predicated region
      $region41: #{encoder_forward.3} parent=5 // pred_check
        _
      $region42: #{encoder_forward.3} parent=5 // pred_check_branch
        %248 = sbr.rel (%p245) target = $region44
      $region43: #{encoder_forward.3} parent=5 // pred_region
        %s249 = ssub.s32 %s17, 1
        %p250 = pneg %p38
        %p251 = pneg %p35
        %p252 = pneg %p59
        %p253 = pneg %p56
        %p254 = pneg %p80
        %p255 = pneg %p77
        %p256 = pneg %p101
        %p257 = pneg %p98
        %p258 = pneg %p122
        %p259 = pneg %p119
        %p260 = pneg %p143
        %p261 = pneg %p140
        %p262 = pneg %p164
        %p263 = pneg %p161
        %p264 = pneg %p185
        %p265 = pneg %p182
        %p266 = pneg %p206
        %p267 = pneg %p203
        %p268 = scmp.eq.s32.totalorder %s22, 0
        // Predicated region
        $region45: #{encoder_forward.3} parent=43 // pred_check
          %p269 = pneg %p268
        $region46: #{encoder_forward.3} parent=43 // pred_check_branch
          %271 = sbr.rel (%p269) target = $region48
        $region47: #{encoder_forward.3} parent=43 // pred_region
          %v272 = vld [vmem:[%s4] sm:$0x3]
          %v273 = vld [vmem:[%s4 + $0x2] sm:$0x3]
          %vm274 = vcmask 254976
          %275 = vst.msk [vmem:[#allocation2] sm:$0x3] %vm274, %v272
          %276 = vst.msk [vmem:[#allocation2 + $0x2] sm:$0x3] %vm274, %v273
          %v277 = vld [vmem:[%s5] sm:$0x3]
          %v278 = vld [vmem:[%s5 + $0x2] sm:$0x3]
          %279 = vst.msk [vmem:[#allocation3] sm:$0x3] %vm274, %v277
          %280 = vst.msk [vmem:[#allocation3 + $0x2] sm:$0x3] %vm274, %v278
        $region48: #{encoder_forward.3} parent=43 // pred_fallthru
          _
        %s281 = smul.u32 %s22, 2
        %s282 = scalar_lea.vmem %s0, %s281
        %v283 = vld [vmem:[%s282] sm:$0x3]
        %v284 = vld [vmem:[#allocation2] sm:$0x3]
        %v285 = vld [vmem:[#allocation3] sm:$0x3]
        %v286 = vld [vmem:[%s1] sm:$0xff]
        %v287 = vld [vmem:[%s1 + $0x8] sm:$0xff]
        %v288 = vld [vmem:[%s1 + $0x10] sm:$0xff]
        %v289 = vld [vmem:[%s1 + $0x18] sm:$0xff]
        %vm290 = vcmask 261120
        %v292 = vsel %vm290, %v284, 0
        %294 = vmatpush.msra.mxu0 0.0
        %295 = vmatpush.msra.mxu0 0.0
        %296 = vmatpush.msra.mxu0 0.0
        %297 = vmatpush.msra.mxu0 0.0
        %298 = vmatpush.msra.mxu0 0.0
        %299 = vmatpush.msra.mxu0 0.0
        %300 = vmatpush.msra.mxu0 0.0
        %301 = vmatpush.msra.mxu0 0.0
        %302 = vmatpush.msra.mxu0 0.0
        %303 = vmatpush.msra.mxu0 0.0
        %304 = vmatpush.msra.mxu0 0.0
        %305 = vmatpush.msra.mxu0 0.0
        %306 = vmatpush.msra.mxu0 %v289
        %307 = vmatpush.msra.mxu0 %v288
        %308 = vmatpush.msra.mxu0 %v287
        %309 = vmatpush.msra.mxu0 %v286
        %310 = vmatmul.f32.gmra.mxu0 %v292
        %v311 = vpop.f32.mrf.mxu0
        %v312 = vadd.f32 0.0, %v311
        %313 = vdwg.mxu0
        %v314 = vadd.f32 %v283, %v312
        %v315 = vxor.u32 %v314, 2147483648
        %v316 = vmul.f32 %v315, 1.442695
        %v317 = vpow.pop %v316
        %v318 = vadd.f32 %v317, 1.0
        %v319 = vrcp.pop %v318
        %v320 = vmul.f32 %v318, %v319
        %v321 = vsub.f32 1.0, %v320
        %v322 = vmul.f32 %v319, %v321
        %v323 = vadd.f32 %v319, %v322
        %vm324 = vweird.f32 %v318
        %vm325 = vweird.f32 %v319
        %vm326 = vmor %vm324, %vm325
        %v327 = vsel %vm326, %v319, %v323
        %v328 = vand.u32 2147483647, %v318
        %vm329 = vcmp.eq.f32.partialorder %v328, 8.507059e+37
        %v330 = vand.u32 %v318, 2147483648
        %v331 = vor.u32 1.1754944e-38, %v330
        %v332 = vsel %vm329, %v331, %v327
        %v333 = vmul.f32 1.0, %v332
        %v334 = vtanh.pop %v314
        %336 = vrot.lane.b32.xlu0 %v285, 32
        %v337 = vpop.permute.xlu0 %336
        %v339 = vmul.f32 %v333, %v337
        %341 = vrot.lane.b32.xlu0 %v334, 64
        %v342 = vpop.permute.xlu0 %341
        %v344 = vmul.f32 %v333, %v342
        %346 = vrot.lane.b32.xlu0 %v344, 32
        %v347 = vpop.permute.xlu0 %346
        %v349 = vadd.f32 %v339, %v347
        %v350 = vtanh.pop %v349
        %352 = vrot.lane.b32.xlu0 %v350, 64
        %v353 = vpop.permute.xlu0 %352
        %v355 = vmul.f32 %v333, %v353
        %357 = vrot.lane.b32.xlu0 %v355, 32
        %v358 = vpop.permute.xlu0 %357
        %vm360 = vcmask 254976
        %361 = vst.msk [vmem:[#allocation2] sm:$0x3] %vm360, %v358
        %363 = vrot.lane.b32.xlu0 %v349, 96
        %v364 = vpop.permute.xlu0 %363
        %366 = vst.msk [vmem:[#allocation3] sm:$0x3] %vm360, %v364
        %s367 = scalar_lea.vmem [#allocation2], 2
        %v368 = vld [vmem:[%s367] sm:$0x3]
        %s369 = scalar_lea.vmem [#allocation3], 2
        %v370 = vld [vmem:[%s369] sm:$0x3]
        %v371 = vld [vmem:[%s2] sm:$0xff]
        %v372 = vld [vmem:[%s2 + $0x8] sm:$0xff]
        %v373 = vld [vmem:[%s2 + $0x10] sm:$0xff]
        %v374 = vld [vmem:[%s2 + $0x18] sm:$0xff]
        %v375 = vld [vmem:[%s3] sm:$0x1]
        %v377 = vperm.slane %v375, 0
        %v379 = vsel %vm290, %v358, 0
        %381 = vmatpush.msra.mxu0 0.0
        %382 = vmatpush.msra.mxu0 0.0
        %383 = vmatpush.msra.mxu0 0.0
        %384 = vmatpush.msra.mxu0 0.0
        %385 = vmatpush.msra.mxu0 0.0
        %386 = vmatpush.msra.mxu0 0.0
        %387 = vmatpush.msra.mxu0 0.0
        %388 = vmatpush.msra.mxu0 0.0
        %389 = vmatpush.msra.mxu0 0.0
        %390 = vmatpush.msra.mxu0 0.0
        %391 = vmatpush.msra.mxu0 0.0
        %392 = vmatpush.msra.mxu0 0.0
        %393 = vmatpush.msra.mxu0 %v374
        %394 = vmatpush.msra.mxu0 %v373
        %395 = vmatpush.msra.mxu0 %v372
        %396 = vmatpush.msra.mxu0 %v371
        %397 = vmatmul.f32.gmra.mxu0 %v379
        %v398 = vpop.f32.mrf.mxu0
        %v399 = vadd.f32 %v377, %v398
        %400 = vdwg.mxu0
        %s401 = scalar_lea.vmem %s1, 32
        %v402 = vld [vmem:[%s401] sm:$0xff]
        %v403 = vld [vmem:[%s401 + $0x8] sm:$0xff]
        %v404 = vld [vmem:[%s401 + $0x10] sm:$0xff]
        %v405 = vld [vmem:[%s401 + $0x18] sm:$0xff]
        %v407 = vsel %vm290, %v368, 0
        %409 = vmatpush.msra.mxu0 0.0
        %410 = vmatpush.msra.mxu0 0.0
        %411 = vmatpush.msra.mxu0 0.0
        %412 = vmatpush.msra.mxu0 0.0
        %413 = vmatpush.msra.mxu0 0.0
        %414 = vmatpush.msra.mxu0 0.0
        %415 = vmatpush.msra.mxu0 0.0
        %416 = vmatpush.msra.mxu0 0.0
        %417 = vmatpush.msra.mxu0 0.0
        %418 = vmatpush.msra.mxu0 0.0
        %419 = vmatpush.msra.mxu0 0.0
        %420 = vmatpush.msra.mxu0 0.0
        %421 = vmatpush.msra.mxu0 %v405
        %422 = vmatpush.msra.mxu0 %v404
        %423 = vmatpush.msra.mxu0 %v403
        %424 = vmatpush.msra.mxu0 %v402
        %425 = vmatmul.f32.gmra.mxu0 %v407
        %v426 = vpop.f32.mrf.mxu0
        %v427 = vadd.f32 0.0, %v426
        %428 = vdwg.mxu0
        %v429 = vadd.f32 %v399, %v427
        %v430 = vxor.u32 %v429, 2147483648
        %v431 = vmul.f32 %v430, 1.442695
        %v432 = vpow.pop %v431
        %v433 = vadd.f32 %v432, 1.0
        %v434 = vrcp.pop %v433
        %v435 = vmul.f32 %v433, %v434
        %v436 = vsub.f32 1.0, %v435
        %v437 = vmul.f32 %v434, %v436
        %v438 = vadd.f32 %v434, %v437
        %vm439 = vweird.f32 %v433
        %vm440 = vweird.f32 %v434
        %vm441 = vmor %vm439, %vm440
        %v442 = vsel %vm441, %v434, %v438
        %v443 = vand.u32 2147483647, %v433
        %vm444 = vcmp.eq.f32.partialorder %v443, 8.507059e+37
        %v445 = vand.u32 %v433, 2147483648
        %v446 = vor.u32 1.1754944e-38, %v445
        %v447 = vsel %vm444, %v446, %v442
        %v448 = vmul.f32 1.0, %v447
        %v449 = vtanh.pop %v429
        %451 = vrot.lane.b32.xlu0 %v370, 32
        %v452 = vpop.permute.xlu0 %451
        %v454 = vmul.f32 %v448, %v452
        %456 = vrot.lane.b32.xlu0 %v449, 64
        %v457 = vpop.permute.xlu0 %456
        %v459 = vmul.f32 %v448, %v457
        %461 = vrot.lane.b32.xlu0 %v459, 32
        %v462 = vpop.permute.xlu0 %461
        %v464 = vadd.f32 %v454, %v462
        %v465 = vtanh.pop %v464
        %467 = vrot.lane.b32.xlu0 %v465, 64
        %v468 = vpop.permute.xlu0 %467
        %v470 = vmul.f32 %v448, %v468
        %472 = vrot.lane.b32.xlu0 %v470, 32
        %v473 = vpop.permute.xlu0 %472
        %475 = vst.msk [vmem:[%s367] sm:$0x3] %vm360, %v473
        %477 = vrot.lane.b32.xlu0 %v464, 96
        %v478 = vpop.permute.xlu0 %477
        %480 = vst.msk [vmem:[%s369] sm:$0x3] %vm360, %v478
        %s481 = scalar_lea.vmem [#allocation4], %s281
        %482 = vst.msk [vmem:[%s481] sm:$0x3] %vm360, %v473
        %p483 = scmp.eq.s32.totalorder %s22, 7
        // Predicated region
        $region49: #{encoder_forward.3} parent=43 // pred_check
          %p484 = pneg %p483
        $region50: #{encoder_forward.3} parent=43 // pred_check_branch
          %486 = sbr.rel (%p484) target = $region52
        $region51: #{encoder_forward.3} parent=43 // pred_region
          %v487 = vld [vmem:[#allocation2] sm:$0x3]
          %v488 = vld [vmem:[#allocation2 + $0x2] sm:$0x3]
          %489 = vst.msk [vmem:[#allocation6] sm:$0x3] %vm360, %v487
          %490 = vst.msk [vmem:[#allocation6 + $0x2] sm:$0x3] %vm360, %v488
          %v491 = vld [vmem:[#allocation3] sm:$0x3]
          %v492 = vld [vmem:[#allocation3 + $0x2] sm:$0x3]
          %493 = vst.msk [vmem:[#allocation8] sm:$0x3] %vm360, %v491
          %494 = vst.msk [vmem:[#allocation8 + $0x2] sm:$0x3] %vm360, %v492
        $region52: #{encoder_forward.3} parent=43 // pred_fallthru
          _
        // Predicated region
        $region53: #{encoder_forward.3} parent=43 // pred_check
          %p495 = pneg %p161
        $region54: #{encoder_forward.3} parent=43 // pred_check_branch
          %497 = sbr.rel (%p495) target = $region56
        $region55: #{encoder_forward.3} parent=43 // pred_region
          %499 = vsyncadd [#allocation5], 0
          %s500 = sshll.u32 [#allocation4], 4
          %s501 = int_to_ptr.vmem [resolvable:$true] %s500
          %s502 = sshll.u32 %s6, 4
          %s503 = int_to_ptr.hbm [resolvable:$true] %s502
          %508 = dma.vmem_to_hbm [thread:$0]  %s501, 256, %s503, [#allocation5], 32, 32, 2
        $region56: #{encoder_forward.3} parent=43 // pred_fallthru
          _
        // Predicated region
        $region57: #{encoder_forward.3} parent=43 // pred_check
          %p509 = pneg %p182
        $region58: #{encoder_forward.3} parent=43 // pred_check_branch
          %511 = sbr.rel (%p509) target = $region60
        $region59: #{encoder_forward.3} parent=43 // pred_region
          %513 = vsyncadd [#allocation7], 0
          %s514 = sshll.u32 [#allocation6], 4
          %s515 = int_to_ptr.vmem [resolvable:$true] %s514
          %s516 = sshll.u32 %s7, 4
          %s517 = int_to_ptr.hbm [resolvable:$true] %s516
          %522 = dma.vmem_to_hbm [thread:$0]  %s515, 64, %s517, [#allocation7], 32, 32, 2
        $region60: #{encoder_forward.3} parent=43 // pred_fallthru
          _
        // Predicated region
        $region61: #{encoder_forward.3} parent=43 // pred_check
          %p523 = pneg %p203
        $region62: #{encoder_forward.3} parent=43 // pred_check_branch
          %525 = sbr.rel (%p523) target = $region64
        $region63: #{encoder_forward.3} parent=43 // pred_region
          %527 = vsyncadd [#allocation7], 0
          %s528 = sshll.u32 [#allocation8], 4
          %s529 = int_to_ptr.vmem [resolvable:$true] %s528
          %s530 = sshll.u32 %s8, 4
          %s531 = int_to_ptr.hbm [resolvable:$true] %s530
          %536 = dma.vmem_to_hbm [thread:$0]  %s529, 64, %s531, [#allocation7], 32, 32, 2
        $region64: #{encoder_forward.3} parent=43 // pred_fallthru
          _
        // Predicated region
        $region65: #{encoder_forward.3} parent=43 // pred_check
          %p537 = pneg %p161
        $region66: #{encoder_forward.3} parent=43 // pred_check_branch
          %539 = sbr.rel (%p537) target = $region68
        $region67: #{encoder_forward.3} parent=43 // pred_region
          %541 = dma.done [#allocation5], 256
        $region68: #{encoder_forward.3} parent=43 // pred_fallthru
          _
        // Predicated region
        $region69: #{encoder_forward.3} parent=43 // pred_check
          %p542 = pneg %p182
        $region70: #{encoder_forward.3} parent=43 // pred_check_branch
          %544 = sbr.rel (%p542) target = $region72
        $region71: #{encoder_forward.3} parent=43 // pred_region
          %546 = dma.done [#allocation7], 64
        $region72: #{encoder_forward.3} parent=43 // pred_fallthru
          _
        // Predicated region
        $region73: #{encoder_forward.3} parent=43 // pred_check
          %p547 = pneg %p203
        $region74: #{encoder_forward.3} parent=43 // pred_check_branch
          %549 = sbr.rel (%p547) target = $region76
        $region75: #{encoder_forward.3} parent=43 // pred_region
          %551 = dma.done [#allocation7], 64
        $region76: #{encoder_forward.3} parent=43 // pred_fallthru
          _
      $region44: #{encoder_forward.3} parent=5 // pred_fallthru
        _
      %p552 = scmp.le.s32.totalorder 2, %s17
      // Predicated region
      $region77: #{encoder_forward.3} parent=5 // pred_check
        %p553 = pneg %p552
      $region78: #{encoder_forward.3} parent=5 // pred_check_branch
        %555 = sbr.rel (%p553) target = $region80
      $region79: #{encoder_forward.3} parent=5 // pred_region
        %s556 = ssub.s32 %s17, 2
      $region80: #{encoder_forward.3} parent=5 // pred_fallthru
        _
    $region6: #{encoder_forward.3} parent=1 // loop_footer
      %s21 = sadd.s32 1, %s17
    $region7: #{encoder_forward.3} parent=1 // loop_footer_branch
      %16 = sbr.rel target = $region3
    $region8: #{encoder_forward.3} parent=1 // loop_exit
      _
    %557 = vsyncpa [#allocation5], 1
    %s558 = scalar_lea.sflag [#allocation5], 1
    %559 = vsyncpa %s558, 1
    %560 = vsyncpa [#allocation7], 1

</llo_original>
